<compile_context>
chip_gen: v5e
topology: v5e:2x2
jax: 0.10.0
libtpu: 0.0.40
codegen_flags: <defaults>
</compile_context>

<pallas_src>
import functools
import math

import jax
import jax.numpy as jnp
from jax.experimental import pallas as pl
from jax.experimental.pallas import tpu as pltpu


def cross_attention_kernel(
    x_ref,       # (1, tq,  d_embed)   bf16
    y_ref,       # (1, Lkv, d_cross)   bf16
    wq_ref,      # (d_embed, d_embed)  bf16  (1/sqrt(dh) folded in)
    bq_ref,      # (1, d_embed)        f32   (1/sqrt(dh) folded in)
    wk_ref,      # (d_cross, d_embed)  bf16
    bk_ref,      # (1, d_embed)        f32
    wv_ref,      # (d_cross, d_embed)  bf16
    bv_ref,      # (1, d_embed)        f32
    wo_ref,      # (d_embed, d_embed)  bf16
    bo_ref,      # (1, d_embed)        f32
    o_ref,       # (1, tq, d_embed)
    k_scratch,   # (Lkv, d_embed)      bf16  persistent VMEM
    v_scratch,   # (Lkv, d_embed)      bf16  persistent VMEM
    *,
    n_heads: int,
):
    f32 = jnp.float32
    bf16 = jnp.bfloat16

    # K/V do not depend on the query tile: project them once per batch element
    # (first qi iteration) into persistent scratch, full-MXU-width, early bf16.
    @pl.when(pl.program_id(1) == 0)
    def _():
        y = y_ref[0]                                              # (Lkv, d_cross)
        k = jnp.dot(y, wk_ref[...], preferred_element_type=f32) + bk_ref[...]
        v = jnp.dot(y, wv_ref[...], preferred_element_type=f32) + bv_ref[...]
        k_scratch[...] = k.astype(bf16)
        v_scratch[...] = v.astype(bf16)

    x = x_ref[0]                                                  # (tq, d_embed)
    # Full-width Q projection; scale already folded into wq/bq wrapper-side.
    q = (jnp.dot(x, wq_ref[...], preferred_element_type=f32)
         + bq_ref[...]).astype(bf16)                              # (tq, d_embed)

    d_embed = q.shape[1]
    d_head = d_embed // n_heads

    out = None  # (tq, d_embed) f32 accumulator == concat(heads) @ Wo
    for h in range(n_heads):
        sl = slice(h * d_head, (h + 1) * d_head)
        q_h = q[:, sl]                                            # (tq,  dh) bf16
        k_h = k_scratch[:, sl]                                    # (Lkv, dh) bf16
        v_h = v_scratch[:, sl]                                    # (Lkv, dh) bf16

        # Scores: contract the last dim of both operands (K^T folded into the
        # dot_general dimension numbers, no explicit transpose).
        s = jax.lax.dot_general(q_h, k_h, (((1,), (1,)), ((), ())),
                                preferred_element_type=f32)       # (tq, Lkv) f32

        # Numerically stable softmax in f32 (v5e-safe); normalization deferred.
        m = jnp.max(s, axis=-1, keepdims=True)
        p = jnp.exp(s - m)
        l = jnp.sum(p, axis=-1, keepdims=True)

        acc = jnp.dot(p.astype(bf16), v_h,
                      preferred_element_type=f32)                 # (tq, dh) f32
        acc = acc * pl.reciprocal(l, approx=True)                 # EUP vrcp

        # Per-head output projection straight into d_embed; summing over heads
        # is equivalent to concat(heads) @ Wo (no (H, tq, d_embed) tensor).
        contrib = jnp.dot(acc.astype(bf16), wo_ref[sl, :],
                          preferred_element_type=f32)             # (tq, d_embed)
        out = contrib if out is None else out + contrib

    o_ref[0] = (out + bo_ref[...]).astype(o_ref.dtype)


def cross_attention(x, y, params, n_heads):
    """x: (B, Lq, d_embed), y: (B, Lkv, d_cross) -> (B, Lq, d_embed)."""
    B, Lq, d_embed = x.shape
    _, Lkv, d_cross = y.shape
    d_head = d_embed // n_heads
    assert n_heads * d_head == d_embed

    wq, bq, wk, bk, wv, bv, wo, bo = params
    scale = 1.0 / math.sqrt(d_head)
    bf16 = jnp.bfloat16
    f32 = jnp.float32

    # bf16 weights (halved DMA/VMEM footprint); scale folded into the Q proj.
    wq_b = (wq * scale).astype(bf16)
    bq_r = (bq * scale).reshape(1, d_embed).astype(f32)
    wk_b = wk.astype(bf16)
    bk_r = bk.reshape(1, d_embed).astype(f32)
    wv_b = wv.astype(bf16)
    bv_r = bv.reshape(1, d_embed).astype(f32)
    wo_b = wo.astype(bf16)
    bo_r = bo.reshape(1, d_embed).astype(f32)

    xb = x.astype(bf16)
    yb = y.astype(bf16)

    # Larger Lq tiles amortize weight DMAs / per-step overhead (v5e/v6e have
    # 128 MiB VMEM; 128-256 is also fine on v7x); otherwise one full tile.
    tq = Lq
    for cand in (256, 128):
        if Lq >= cand and Lq % cand == 0:
            tq = cand
            break
    grid = (B, Lq // tq)

    kernel = functools.partial(cross_attention_kernel, n_heads=n_heads)

    def run(single_buffer_weights: bool):
        # Constant-index weights never re-DMA; single-buffering them avoids
        # the default 2x VMEM allocation (significant at production d_embed).
        wkw = {"pipeline_mode": pl.Buffered(1)} if single_buffer_weights else {}
        wspec = lambda shp: pl.BlockSpec(shp, lambda b, qi: (0, 0), **wkw)

        return pl.pallas_call(
            kernel,
            out_shape=jax.ShapeDtypeStruct((B, Lq, d_embed), x.dtype),
            grid=grid,
            in_specs=[
                pl.BlockSpec((1, tq, d_embed), lambda b, qi: (b, qi, 0)),   # x
                pl.BlockSpec((1, Lkv, d_cross), lambda b, qi: (b, 0, 0)),   # y
                wspec(wq_b.shape), wspec(bq_r.shape),
                wspec(wk_b.shape), wspec(bk_r.shape),
                wspec(wv_b.shape), wspec(bv_r.shape),
                wspec(wo_b.shape), wspec(bo_r.shape),
            ],
            out_specs=pl.BlockSpec((1, tq, d_embed), lambda b, qi: (b, qi, 0)),
            scratch_shapes=[
                pltpu.VMEM((Lkv, d_embed), bf16),   # K, reused across Lq tiles
                pltpu.VMEM((Lkv, d_embed), bf16),   # V, reused across Lq tiles
            ],
            compiler_params=pltpu.CompilerParams(
                # qi must be "arbitrary": K/V scratch is filled at qi == 0 and
                # reused; batch axis stays "parallel" for megacore sharding.
                dimension_semantics=("parallel", "arbitrary"),
                vmem_limit_bytes=64 * 1024 * 1024,
            ),
        )(xb, yb, wq_b, bq_r, wk_b, bk_r, wv_b, bv_r, wo_b, bo_r)

    try:
        return run(True)
    except Exception:
        # pl.Buffered(1) single-buffering not supported by this jax version:
        # fall back to default double-buffered weight specs (correctness
        # identical, slightly larger VMEM footprint).
        return run(False)


def reference_cross_attention(x, y, params, n_heads):
    """Pure-JAX f32 reference mirroring the PyTorch forward exactly."""
    wq, bq, wk, bk, wv, bv, wo, bo = params
    B, Lq, d_embed = x.shape
    d_head = d_embed // n_heads

    q = x @ wq + bq
    k = y @ wk + bk
    v = y @ wv + bv

    q = q.reshape(B, Lq, n_heads, d_head).transpose(0, 2, 1, 3)
    k = k.reshape(B, -1, n_heads, d_head).transpose(0, 2, 1, 3)
    v = v.reshape(B, -1, n_heads, d_head).transpose(0, 2, 1, 3)

    w = (q @ jnp.swapaxes(k, -1, -2)) / math.sqrt(d_head)
    w = jax.nn.softmax(w, axis=-1)
    out = w @ v
    out = out.transpose(0, 2, 1, 3).reshape(B, Lq, d_embed)
    return out @ wo + bo


def init_params(key, d_embed, d_cross, dtype=jnp.float32):
    """Deterministic param init (PyTorch Linear-style uniform bounds).

    Weights are stored pre-transposed as (d_in, d_out); bias as (d_out,).
    """
    ks = jax.random.split(key, 8)

    def linear(kw, kb, d_in, d_out):
        bound = 1.0 / math.sqrt(d_in)
        w = jax.random.uniform(kw, (d_in, d_out), dtype, -bound, bound)
        b = jax.random.uniform(kb, (d_out,), dtype, -bound, bound)
        return w, b

    wq, bq = linear(ks[0], ks[1], d_embed, d_embed)
    wk, bk = linear(ks[2], ks[3], d_cross, d_embed)
    wv, bv = linear(ks[4], ks[5], d_cross, d_embed)
    wo, bo = linear(ks[6], ks[7], d_embed, d_embed)
    return (wq, bq, wk, bk, wv, bv, wo, bo)


if __name__ == "__main__":
    key = jax.random.PRNGKey(0)
    k_x, k_y, k_p = jax.random.split(key, 3)

    B, Lq, Lkv = 2, 16, 8
    n_heads, d_embed, d_cross = 4, 32, 24

    x = jax.random.normal(k_x, (B, Lq, d_embed), jnp.float32)
    y = jax.random.normal(k_y, (B, Lkv, d_cross), jnp.float32)
    params = init_params(k_p, d_embed, d_cross)

    out = jax.block_until_ready(cross_attention(x, y, params, n_heads))
    ref = reference_cross_attention(x, y, params, n_heads)

    assert out.shape == (B, Lq, d_embed)
    # bf16 MXU operands + approx reciprocal -> relaxed tolerance vs the f32
    # reference (still tight enough to catch structural bugs).
    err = jnp.max(jnp.abs(out - ref))
    assert jnp.allclose(out, ref, atol=1e-1, rtol=1e-1), f"max abs err = {err}"

    print("KERNEL_OK")
</pallas_src>

<mosaic_0001>
module attributes {stable_mosaic.version = 11 : i64} {
  func.func @cross_attention_kernel(%arg0: i32, %arg1: i32, %arg2: memref<1x16x32xbf16, #tpu.memory_space<vmem>>, %arg3: memref<1x8x24xbf16, #tpu.memory_space<vmem>>, %arg4: memref<32x32xbf16, #tpu.memory_space<vmem>>, %arg5: memref<1x32xf32, #tpu.memory_space<vmem>>, %arg6: memref<24x32xbf16, #tpu.memory_space<vmem>>, %arg7: memref<1x32xf32, #tpu.memory_space<vmem>>, %arg8: memref<24x32xbf16, #tpu.memory_space<vmem>>, %arg9: memref<1x32xf32, #tpu.memory_space<vmem>>, %arg10: memref<32x32xbf16, #tpu.memory_space<vmem>>, %arg11: memref<1x32xf32, #tpu.memory_space<vmem>>, %arg12: memref<1x16x32xf32, #tpu.memory_space<vmem>>, %arg13: memref<8x32xbf16, #tpu.memory_space<vmem>>, %arg14: memref<8x32xbf16, #tpu.memory_space<vmem>>) attributes {dimension_semantics = [#tpu.dimension_semantics<parallel>, #tpu.dimension_semantics<arbitrary>], iteration_bounds = array<i64: 2, 1>, scalar_prefetch = 0 : i64, scratch_operands = 2 : i64, tpu.core_type = #tpu.core_type<tc>, window_params = [{transform_indices = @transform_0, window_bounds = array<i64: 1, 16, 32>}, {transform_indices = @transform_1, window_bounds = array<i64: 1, 8, 24>}, {pipeline_mode = #tpu.pipeline_mode<synchronous>, transform_indices = @transform_2, window_bounds = array<i64: 32, 32>}, {pipeline_mode = #tpu.pipeline_mode<synchronous>, transform_indices = @transform_3, window_bounds = array<i64: 1, 32>}, {pipeline_mode = #tpu.pipeline_mode<synchronous>, transform_indices = @transform_4, window_bounds = array<i64: 24, 32>}, {pipeline_mode = #tpu.pipeline_mode<synchronous>, transform_indices = @transform_5, window_bounds = array<i64: 1, 32>}, {pipeline_mode = #tpu.pipeline_mode<synchronous>, transform_indices = @transform_6, window_bounds = array<i64: 24, 32>}, {pipeline_mode = #tpu.pipeline_mode<synchronous>, transform_indices = @transform_7, window_bounds = array<i64: 1, 32>}, {pipeline_mode = #tpu.pipeline_mode<synchronous>, transform_indices = @transform_8, window_bounds = array<i64: 32, 32>}, {pipeline_mode = #tpu.pipeline_mode<synchronous>, transform_indices = @transform_9, window_bounds = array<i64: 1, 32>}, {transform_indices = @transform_10, window_bounds = array<i64: 1, 16, 32>}]} {
    %c0_i32 = arith.constant 0 : i32
    %0 = arith.cmpi eq, %arg1, %c0_i32 : i32
    %1 = arith.extui %0 : i1 to i32
    %c0_i32_0 = arith.constant 0 : i32
    %2 = arith.cmpi ne, %1, %c0_i32_0 : i32
    scf.if %2 {
      %c0_53 = arith.constant 0 : index
      %c0_54 = arith.constant 0 : index
      %c0_55 = arith.constant 0 : index
      %96 = vector.load %arg3[%c0_53, %c0_54, %c0_55] : memref<1x8x24xbf16, #tpu.memory_space<vmem>>, vector<1x8x24xbf16>
      %97 = vector.shape_cast %96 : vector<1x8x24xbf16> to vector<8x24xbf16>
      %c0_56 = arith.constant 0 : index
      %c0_57 = arith.constant 0 : index
      %98 = vector.load %arg6[%c0_56, %c0_57] : memref<24x32xbf16, #tpu.memory_space<vmem>>, vector<24x32xbf16>
      %cst_58 = arith.constant dense<0.000000e+00> : vector<8x32xf32>
      %99 = tpu.matmul %97, %98, %cst_58 {dimension_numbers = #tpu.dot_dimension_numbers<[1], [0], [0], [1], [0, 0, 1, 1], [], []>} : vector<8x24xbf16>, vector<24x32xbf16>, vector<8x32xf32> -> vector<8x32xf32>
      %c0_59 = arith.constant 0 : index
      %c0_60 = arith.constant 0 : index
      %100 = vector.load %arg7[%c0_59, %c0_60] : memref<1x32xf32, #tpu.memory_space<vmem>>, vector<1x32xf32>
      %101 = vector.broadcast %100 : vector<1x32xf32> to vector<8x32xf32>
      %102 = arith.addf %99, %101 : vector<8x32xf32>
      %c0_61 = arith.constant 0 : index
      %c0_62 = arith.constant 0 : index
      %103 = vector.load %arg8[%c0_61, %c0_62] : memref<24x32xbf16, #tpu.memory_space<vmem>>, vector<24x32xbf16>
      %cst_63 = arith.constant dense<0.000000e+00> : vector<8x32xf32>
      %104 = tpu.matmul %97, %103, %cst_63 {dimension_numbers = #tpu.dot_dimension_numbers<[1], [0], [0], [1], [0, 0, 1, 1], [], []>} : vector<8x24xbf16>, vector<24x32xbf16>, vector<8x32xf32> -> vector<8x32xf32>
      %c0_64 = arith.constant 0 : index
      %c0_65 = arith.constant 0 : index
      %105 = vector.load %arg9[%c0_64, %c0_65] : memref<1x32xf32, #tpu.memory_space<vmem>>, vector<1x32xf32>
      %106 = vector.broadcast %105 : vector<1x32xf32> to vector<8x32xf32>
      %107 = arith.addf %104, %106 : vector<8x32xf32>
      %108 = arith.truncf %102 : vector<8x32xf32> to vector<8x32xbf16>
      %c0_66 = arith.constant 0 : index
      %c0_67 = arith.constant 0 : index
      %109 = vector.load %arg13[%c0_66, %c0_67] : memref<8x32xbf16, #tpu.memory_space<vmem>>, vector<8x32xbf16>
      tpu.vector_store %arg13[%c0_66, %c0_67], %108 {strides = array<i32>} : memref<8x32xbf16, #tpu.memory_space<vmem>>, vector<8x32xbf16>,
      %110 = arith.truncf %107 : vector<8x32xf32> to vector<8x32xbf16>
      %c0_68 = arith.constant 0 : index
      %c0_69 = arith.constant 0 : index
      %111 = vector.load %arg14[%c0_68, %c0_69] : memref<8x32xbf16, #tpu.memory_space<vmem>>, vector<8x32xbf16>
      tpu.vector_store %arg14[%c0_68, %c0_69], %110 {strides = array<i32>} : memref<8x32xbf16, #tpu.memory_space<vmem>>, vector<8x32xbf16>,
    } else {
    }
    %c0 = arith.constant 0 : index
    %c0_1 = arith.constant 0 : index
    %c0_2 = arith.constant 0 : index
    %3 = vector.load %arg2[%c0, %c0_1, %c0_2] : memref<1x16x32xbf16, #tpu.memory_space<vmem>>, vector<1x16x32xbf16>
    %4 = vector.shape_cast %3 : vector<1x16x32xbf16> to vector<16x32xbf16>
    %c0_3 = arith.constant 0 : index
    %c0_4 = arith.constant 0 : index
    %5 = vector.load %arg4[%c0_3, %c0_4] : memref<32x32xbf16, #tpu.memory_space<vmem>>, vector<32x32xbf16>
    %cst = arith.constant dense<0.000000e+00> : vector<16x32xf32>
    %6 = tpu.matmul %4, %5, %cst {dimension_numbers = #tpu.dot_dimension_numbers<[1], [0], [0], [1], [0, 0, 1, 1], [], []>} : vector<16x32xbf16>, vector<32x32xbf16>, vector<16x32xf32> -> vector<16x32xf32>
    %c0_5 = arith.constant 0 : index
    %c0_6 = arith.constant 0 : index
    %7 = vector.load %arg5[%c0_5, %c0_6] : memref<1x32xf32, #tpu.memory_space<vmem>>, vector<1x32xf32>
    %8 = vector.broadcast %7 : vector<1x32xf32> to vector<16x32xf32>
    %9 = arith.addf %6, %8 : vector<16x32xf32>
    %10 = arith.truncf %9 : vector<16x32xf32> to vector<16x32xbf16>
    %11 = vector.extract_strided_slice %10 {offsets = [0, 0], sizes = [16, 8], strides = [1, 1]} : vector<16x32xbf16> to vector<16x8xbf16>
    %c0_7 = arith.constant 0 : index
    %c0_8 = arith.constant 0 : index
    %12 = vector.load %arg13[%c0_7, %c0_8] : memref<8x32xbf16, #tpu.memory_space<vmem>>, vector<8x8xbf16>
    %c0_9 = arith.constant 0 : index
    %c0_10 = arith.constant 0 : index
    %13 = vector.load %arg14[%c0_9, %c0_10] : memref<8x32xbf16, #tpu.memory_space<vmem>>, vector<8x8xbf16>
    %cst_11 = arith.constant dense<0.000000e+00> : vector<16x8xf32>
    %14 = tpu.matmul %11, %12, %cst_11 {dimension_numbers = #tpu.dot_dimension_numbers<[1], [1], [0], [0], [0, 0, 1, 0], [], []>} : vector<16x8xbf16>, vector<8x8xbf16>, vector<16x8xf32> -> vector<16x8xf32>
    %cst_12 = arith.constant dense<0xFF800000> : vector<16xf32>
    %15 = vector.multi_reduction <maximumf>, %14, %cst_12 [1] : vector<16x8xf32> to vector<16xf32>
    %16 = vector.shape_cast %15 : vector<16xf32> to vector<16x1xf32>
    %17 = vector.broadcast %16 : vector<16x1xf32> to vector<16x8xf32>
    %18 = arith.subf %14, %17 : vector<16x8xf32>
    %19 = math.exp %18 : vector<16x8xf32>
    %cst_13 = arith.constant dense<0.000000e+00> : vector<16xf32>
    %20 = vector.multi_reduction <add>, %19, %cst_13 [1] : vector<16x8xf32> to vector<16xf32>
    %21 = vector.shape_cast %20 : vector<16xf32> to vector<16x1xf32>
    %22 = arith.truncf %19 : vector<16x8xf32> to vector<16x8xbf16>
    %cst_14 = arith.constant dense<0.000000e+00> : vector<16x8xf32>
    %23 = tpu.matmul %22, %13, %cst_14 {dimension_numbers = #tpu.dot_dimension_numbers<[1], [0], [0], [1], [0, 0, 1, 1], [], []>} : vector<16x8xbf16>, vector<8x8xbf16>, vector<16x8xf32> -> vector<16x8xf32>
    %24 = tpu.reciprocal %21 {approx = true} : vector<16x1xf32> -> vector<16x1xf32>
    %25 = vector.broadcast %24 : vector<16x1xf32> to vector<16x8xf32>
    %26 = arith.mulf %23, %25 : vector<16x8xf32>
    %27 = arith.truncf %26 : vector<16x8xf32> to vector<16x8xbf16>
    %c0_15 = arith.constant 0 : index
    %c0_16 = arith.constant 0 : index
    %28 = vector.load %arg10[%c0_15, %c0_16] : memref<32x32xbf16, #tpu.memory_space<vmem>>, vector<8x32xbf16>
    %cst_17 = arith.constant dense<0.000000e+00> : vector<16x32xf32>
    %29 = tpu.matmul %27, %28, %cst_17 {dimension_numbers = #tpu.dot_dimension_numbers<[1], [0], [0], [1], [0, 0, 1, 1], [], []>} : vector<16x8xbf16>, vector<8x32xbf16>, vector<16x32xf32> -> vector<16x32xf32>
    %30 = vector.extract_strided_slice %10 {offsets = [0, 8], sizes = [16, 8], strides = [1, 1]} : vector<16x32xbf16> to vector<16x8xbf16>
    %c0_18 = arith.constant 0 : index
    %c8 = arith.constant 8 : index
    %31 = vector.load %arg13[%c0_18, %c8] : memref<8x32xbf16, #tpu.memory_space<vmem>>, vector<8x8xbf16>
    %c0_19 = arith.constant 0 : index
    %c8_20 = arith.constant 8 : index
    %32 = vector.load %arg14[%c0_19, %c8_20] : memref<8x32xbf16, #tpu.memory_space<vmem>>, vector<8x8xbf16>
    %cst_21 = arith.constant dense<0.000000e+00> : vector<16x8xf32>
    %33 = tpu.matmul %30, %31, %cst_21 {dimension_numbers = #tpu.dot_dimension_numbers<[1], [1], [0], [0], [0, 0, 1, 0], [], []>} : vector<16x8xbf16>, vector<8x8xbf16>, vector<16x8xf32> -> vector<16x8xf32>
    %cst_22 = arith.constant dense<0xFF800000> : vector<16xf32>
    %34 = vector.multi_reduction <maximumf>, %33, %cst_22 [1] : vector<16x8xf32> to vector<16xf32>
    %35 = vector.shape_cast %34 : vector<16xf32> to vector<16x1xf32>
    %36 = vector.broadcast %35 : vector<16x1xf32> to vector<16x8xf32>
    %37 = arith.subf %33, %36 : vector<16x8xf32>
    %38 = math.exp %37 : vector<16x8xf32>
    %cst_23 = arith.constant dense<0.000000e+00> : vector<16xf32>
    %39 = vector.multi_reduction <add>, %38, %cst_23 [1] : vector<16x8xf32> to vector<16xf32>
    %40 = vector.shape_cast %39 : vector<16xf32> to vector<16x1xf32>
    %41 = arith.truncf %38 : vector<16x8xf32> to vector<16x8xbf16>
    %cst_24 = arith.constant dense<0.000000e+00> : vector<16x8xf32>
    %42 = tpu.matmul %41, %32, %cst_24 {dimension_numbers = #tpu.dot_dimension_numbers<[1], [0], [0], [1], [0, 0, 1, 1], [], []>} : vector<16x8xbf16>, vector<8x8xbf16>, vector<16x8xf32> -> vector<16x8xf32>
    %43 = tpu.reciprocal %40 {approx = true} : vector<16x1xf32> -> vector<16x1xf32>
    %44 = vector.broadcast %43 : vector<16x1xf32> to vector<16x8xf32>
    %45 = arith.mulf %42, %44 : vector<16x8xf32>
    %46 = arith.truncf %45 : vector<16x8xf32> to vector<16x8xbf16>
    %c8_25 = arith.constant 8 : index
    %c0_26 = arith.constant 0 : index
    %47 = vector.load %arg10[%c8_25, %c0_26] : memref<32x32xbf16, #tpu.memory_space<vmem>>, vector<8x32xbf16>
    %cst_27 = arith.constant dense<0.000000e+00> : vector<16x32xf32>
    %48 = tpu.matmul %46, %47, %cst_27 {dimension_numbers = #tpu.dot_dimension_numbers<[1], [0], [0], [1], [0, 0, 1, 1], [], []>} : vector<16x8xbf16>, vector<8x32xbf16>, vector<16x32xf32> -> vector<16x32xf32>
    %49 = arith.addf %29, %48 : vector<16x32xf32>
    %50 = vector.extract_strided_slice %10 {offsets = [0, 16], sizes = [16, 8], strides = [1, 1]} : vector<16x32xbf16> to vector<16x8xbf16>
    %c0_28 = arith.constant 0 : index
    %c16 = arith.constant 16 : index
    %51 = vector.load %arg13[%c0_28, %c16] : memref<8x32xbf16, #tpu.memory_space<vmem>>, vector<8x8xbf16>
    %c0_29 = arith.constant 0 : index
    %c16_30 = arith.constant 16 : index
    %52 = vector.load %arg14[%c0_29, %c16_30] : memref<8x32xbf16, #tpu.memory_space<vmem>>, vector<8x8xbf16>
    %cst_31 = arith.constant dense<0.000000e+00> : vector<16x8xf32>
    %53 = tpu.matmul %50, %51, %cst_31 {dimension_numbers = #tpu.dot_dimension_numbers<[1], [1], [0], [0], [0, 0, 1, 0], [], []>} : vector<16x8xbf16>, vector<8x8xbf16>, vector<16x8xf32> -> vector<16x8xf32>
    %cst_32 = arith.constant dense<0xFF800000> : vector<16xf32>
    %54 = vector.multi_reduction <maximumf>, %53, %cst_32 [1] : vector<16x8xf32> to vector<16xf32>
    %55 = vector.shape_cast %54 : vector<16xf32> to vector<16x1xf32>
    %56 = vector.broadcast %55 : vector<16x1xf32> to vector<16x8xf32>
    %57 = arith.subf %53, %56 : vector<16x8xf32>
    %58 = math.exp %57 : vector<16x8xf32>
    %cst_33 = arith.constant dense<0.000000e+00> : vector<16xf32>
    %59 = vector.multi_reduction <add>, %58, %cst_33 [1] : vector<16x8xf32> to vector<16xf32>
    %60 = vector.shape_cast %59 : vector<16xf32> to vector<16x1xf32>
    %61 = arith.truncf %58 : vector<16x8xf32> to vector<16x8xbf16>
    %cst_34 = arith.constant dense<0.000000e+00> : vector<16x8xf32>
    %62 = tpu.matmul %61, %52, %cst_34 {dimension_numbers = #tpu.dot_dimension_numbers<[1], [0], [0], [1], [0, 0, 1, 1], [], []>} : vector<16x8xbf16>, vector<8x8xbf16>, vector<16x8xf32> -> vector<16x8xf32>
    %63 = tpu.reciprocal %60 {approx = true} : vector<16x1xf32> -> vector<16x1xf32>
    %64 = vector.broadcast %63 : vector<16x1xf32> to vector<16x8xf32>
    %65 = arith.mulf %62, %64 : vector<16x8xf32>
    %66 = arith.truncf %65 : vector<16x8xf32> to vector<16x8xbf16>
    %c16_35 = arith.constant 16 : index
    %c0_36 = arith.constant 0 : index
    %67 = vector.load %arg10[%c16_35, %c0_36] : memref<32x32xbf16, #tpu.memory_space<vmem>>, vector<8x32xbf16>
    %cst_37 = arith.constant dense<0.000000e+00> : vector<16x32xf32>
    %68 = tpu.matmul %66, %67, %cst_37 {dimension_numbers = #tpu.dot_dimension_numbers<[1], [0], [0], [1], [0, 0, 1, 1], [], []>} : vector<16x8xbf16>, vector<8x32xbf16>, vector<16x32xf32> -> vector<16x32xf32>
    %69 = arith.addf %49, %68 : vector<16x32xf32>
    %70 = vector.extract_strided_slice %10 {offsets = [0, 24], sizes = [16, 8], strides = [1, 1]} : vector<16x32xbf16> to vector<16x8xbf16>
    %c0_38 = arith.constant 0 : index
    %c24 = arith.constant 24 : index
    %71 = vector.load %arg13[%c0_38, %c24] : memref<8x32xbf16, #tpu.memory_space<vmem>>, vector<8x8xbf16>
    %c0_39 = arith.constant 0 : index
    %c24_40 = arith.constant 24 : index
    %72 = vector.load %arg14[%c0_39, %c24_40] : memref<8x32xbf16, #tpu.memory_space<vmem>>, vector<8x8xbf16>
    %cst_41 = arith.constant dense<0.000000e+00> : vector<16x8xf32>
    %73 = tpu.matmul %70, %71, %cst_41 {dimension_numbers = #tpu.dot_dimension_numbers<[1], [1], [0], [0], [0, 0, 1, 0], [], []>} : vector<16x8xbf16>, vector<8x8xbf16>, vector<16x8xf32> -> vector<16x8xf32>
    %cst_42 = arith.constant dense<0xFF800000> : vector<16xf32>
    %74 = vector.multi_reduction <maximumf>, %73, %cst_42 [1] : vector<16x8xf32> to vector<16xf32>
    %75 = vector.shape_cast %74 : vector<16xf32> to vector<16x1xf32>
    %76 = vector.broadcast %75 : vector<16x1xf32> to vector<16x8xf32>
    %77 = arith.subf %73, %76 : vector<16x8xf32>
    %78 = math.exp %77 : vector<16x8xf32>
    %cst_43 = arith.constant dense<0.000000e+00> : vector<16xf32>
    %79 = vector.multi_reduction <add>, %78, %cst_43 [1] : vector<16x8xf32> to vector<16xf32>
    %80 = vector.shape_cast %79 : vector<16xf32> to vector<16x1xf32>
    %81 = arith.truncf %78 : vector<16x8xf32> to vector<16x8xbf16>
    %cst_44 = arith.constant dense<0.000000e+00> : vector<16x8xf32>
    %82 = tpu.matmul %81, %72, %cst_44 {dimension_numbers = #tpu.dot_dimension_numbers<[1], [0], [0], [1], [0, 0, 1, 1], [], []>} : vector<16x8xbf16>, vector<8x8xbf16>, vector<16x8xf32> -> vector<16x8xf32>
    %83 = tpu.reciprocal %80 {approx = true} : vector<16x1xf32> -> vector<16x1xf32>
    %84 = vector.broadcast %83 : vector<16x1xf32> to vector<16x8xf32>
    %85 = arith.mulf %82, %84 : vector<16x8xf32>
    %86 = arith.truncf %85 : vector<16x8xf32> to vector<16x8xbf16>
    %c24_45 = arith.constant 24 : index
    %c0_46 = arith.constant 0 : index
    %87 = vector.load %arg10[%c24_45, %c0_46] : memref<32x32xbf16, #tpu.memory_space<vmem>>, vector<8x32xbf16>
    %cst_47 = arith.constant dense<0.000000e+00> : vector<16x32xf32>
    %88 = tpu.matmul %86, %87, %cst_47 {dimension_numbers = #tpu.dot_dimension_numbers<[1], [0], [0], [1], [0, 0, 1, 1], [], []>} : vector<16x8xbf16>, vector<8x32xbf16>, vector<16x32xf32> -> vector<16x32xf32>
    %89 = arith.addf %69, %88 : vector<16x32xf32>
    %c0_48 = arith.constant 0 : index
    %c0_49 = arith.constant 0 : index
    %90 = vector.load %arg11[%c0_48, %c0_49] : memref<1x32xf32, #tpu.memory_space<vmem>>, vector<1x32xf32>
    %91 = vector.broadcast %90 : vector<1x32xf32> to vector<16x32xf32>
    %92 = arith.addf %89, %91 : vector<16x32xf32>
    %c0_50 = arith.constant 0 : index
    %c0_51 = arith.constant 0 : index
    %c0_52 = arith.constant 0 : index
    %93 = vector.load %arg12[%c0_50, %c0_51, %c0_52] : memref<1x16x32xf32, #tpu.memory_space<vmem>>, vector<1x16x32xf32>
    %94 = vector.shape_cast %93 : vector<1x16x32xf32> to vector<16x32xf32>
    %95 = vector.shape_cast %92 : vector<16x32xf32> to vector<1x16x32xf32>
    tpu.vector_store %arg12[%c0_50, %c0_51, %c0_52], %95 {strides = array<i32>} : memref<1x16x32xf32, #tpu.memory_space<vmem>>, vector<1x16x32xf32>,
    return
  }
  func.func @transform_0(%arg0: i32, %arg1: i32) -> (i32, i32, i32) {
    %c0_i32 = arith.constant 0 : i32
    %c0_i32_0 = arith.constant 0 : i32
    return %arg0, %arg1, %c0_i32 : i32, i32, i32
  }
  func.func @transform_1(%arg0: i32, %arg1: i32) -> (i32, i32, i32) {
    %c0_i32 = arith.constant 0 : i32
    %c0_i32_0 = arith.constant 0 : i32
    %c0_i32_1 = arith.constant 0 : i32
    return %arg0, %c0_i32, %c0_i32_0 : i32, i32, i32
  }
  func.func @transform_2(%arg0: i32, %arg1: i32) -> (i32, i32) {
    %c0_i32 = arith.constant 0 : i32
    %c0_i32_0 = arith.constant 0 : i32
    %c0_i32_1 = arith.constant 0 : i32
    return %c0_i32, %c0_i32_0 : i32, i32
  }
  func.func @transform_3(%arg0: i32, %arg1: i32) -> (i32, i32) {
    %c0_i32 = arith.constant 0 : i32
    %c0_i32_0 = arith.constant 0 : i32
    %c0_i32_1 = arith.constant 0 : i32
    return %c0_i32, %c0_i32_0 : i32, i32
  }
  func.func @transform_4(%arg0: i32, %arg1: i32) -> (i32, i32) {
    %c0_i32 = arith.constant 0 : i32
    %c0_i32_0 = arith.constant 0 : i32
    %c0_i32_1 = arith.constant 0 : i32
    return %c0_i32, %c0_i32_0 : i32, i32
  }
  func.func @transform_5(%arg0: i32, %arg1: i32) -> (i32, i32) {
    %c0_i32 = arith.constant 0 : i32
    %c0_i32_0 = arith.constant 0 : i32
    %c0_i32_1 = arith.constant 0 : i32
    return %c0_i32, %c0_i32_0 : i32, i32
  }
  func.func @transform_6(%arg0: i32, %arg1: i32) -> (i32, i32) {
    %c0_i32 = arith.constant 0 : i32
    %c0_i32_0 = arith.constant 0 : i32
    %c0_i32_1 = arith.constant 0 : i32
    return %c0_i32, %c0_i32_0 : i32, i32
  }
  func.func @transform_7(%arg0: i32, %arg1: i32) -> (i32, i32) {
    %c0_i32 = arith.constant 0 : i32
    %c0_i32_0 = arith.constant 0 : i32
    %c0_i32_1 = arith.constant 0 : i32
    return %c0_i32, %c0_i32_0 : i32, i32
  }
  func.func @transform_8(%arg0: i32, %arg1: i32) -> (i32, i32) {
    %c0_i32 = arith.constant 0 : i32
    %c0_i32_0 = arith.constant 0 : i32
    %c0_i32_1 = arith.constant 0 : i32
    return %c0_i32, %c0_i32_0 : i32, i32
  }
  func.func @transform_9(%arg0: i32, %arg1: i32) -> (i32, i32) {
    %c0_i32 = arith.constant 0 : i32
    %c0_i32_0 = arith.constant 0 : i32
    %c0_i32_1 = arith.constant 0 : i32
    return %c0_i32, %c0_i32_0 : i32, i32
  }
  func.func @transform_10(%arg0: i32, %arg1: i32) -> (i32, i32, i32) {
    %c0_i32 = arith.constant 0 : i32
    %c0_i32_0 = arith.constant 0 : i32
    return %arg0, %arg1, %c0_i32 : i32, i32, i32
  }
}

module attributes {stable_mosaic.version = 11 : i64} {
  func.func @cross_attention_kernel(%arg0: i32, %arg1: i32, %arg2: memref<1x16x32xbf16, #tpu.memory_space<vmem>>, %arg3: memref<1x8x24xbf16, #tpu.memory_space<vmem>>, %arg4: memref<32x32xbf16, #tpu.memory_space<vmem>>, %arg5: memref<1x32xf32, #tpu.memory_space<vmem>>, %arg6: memref<24x32xbf16, #tpu.memory_space<vmem>>, %arg7: memref<1x32xf32, #tpu.memory_space<vmem>>, %arg8: memref<24x32xbf16, #tpu.memory_space<vmem>>, %arg9: memref<1x32xf32, #tpu.memory_space<vmem>>, %arg10: memref<32x32xbf16, #tpu.memory_space<vmem>>, %arg11: memref<1x32xf32, #tpu.memory_space<vmem>>, %arg12: memref<1x16x32xf32, #tpu.memory_space<vmem>>, %arg13: memref<8x32xbf16, #tpu.memory_space<vmem>>, %arg14: memref<8x32xbf16, #tpu.memory_space<vmem>>) attributes {dimension_semantics = [#tpu.dimension_semantics<parallel>, #tpu.dimension_semantics<arbitrary>], iteration_bounds = array<i64: 2, 1>, scalar_prefetch = 0 : i64, scratch_operands = 2 : i64, tpu.core_type = #tpu.core_type<tc>, window_params = [{transform_indices = @transform_0, window_bounds = array<i64: 1, 16, 32>}, {transform_indices = @transform_1, window_bounds = array<i64: 1, 8, 24>}, {pipeline_mode = #tpu.pipeline_mode<synchronous>, transform_indices = @transform_2, window_bounds = array<i64: 32, 32>}, {pipeline_mode = #tpu.pipeline_mode<synchronous>, transform_indices = @transform_3, window_bounds = array<i64: 1, 32>}, {pipeline_mode = #tpu.pipeline_mode<synchronous>, transform_indices = @transform_4, window_bounds = array<i64: 24, 32>}, {pipeline_mode = #tpu.pipeline_mode<synchronous>, transform_indices = @transform_5, window_bounds = array<i64: 1, 32>}, {pipeline_mode = #tpu.pipeline_mode<synchronous>, transform_indices = @transform_6, window_bounds = array<i64: 24, 32>}, {pipeline_mode = #tpu.pipeline_mode<synchronous>, transform_indices = @transform_7, window_bounds = array<i64: 1, 32>}, {pipeline_mode = #tpu.pipeline_mode<synchronous>, transform_indices = @transform_8, window_bounds = array<i64: 32, 32>}, {pipeline_mode = #tpu.pipeline_mode<synchronous>, transform_indices = @transform_9, window_bounds = array<i64: 1, 32>}, {transform_indices = @transform_10, window_bounds = array<i64: 1, 16, 32>}]} {
    %c0_i32 = arith.constant 0 : i32
    %0 = arith.cmpi eq, %arg1, %c0_i32 : i32
    %1 = arith.extui %0 : i1 to i32
    %c0_i32_0 = arith.constant 0 : i32
    %2 = arith.cmpi ne, %1, %c0_i32_0 : i32
    scf.if %2 {
      %c0_53 = arith.constant 0 : index
      %c0_54 = arith.constant 0 : index
      %c0_55 = arith.constant 0 : index
      %96 = vector.load %arg3[%c0_53, %c0_54, %c0_55] : memref<1x8x24xbf16, #tpu.memory_space<vmem>>, vector<1x8x24xbf16>
      %97 = vector.shape_cast %96 : vector<1x8x24xbf16> to vector<8x24xbf16>
      %c0_56 = arith.constant 0 : index
      %c0_57 = arith.constant 0 : index
      %98 = vector.load %arg6[%c0_56, %c0_57] : memref<24x32xbf16, #tpu.memory_space<vmem>>, vector<24x32xbf16>
      %cst_58 = arith.constant dense<0.000000e+00> : vector<8x32xf32>
      %99 = tpu.matmul %97, %98, %cst_58 {dimension_numbers = #tpu.dot_dimension_numbers<[1], [0], [0], [1], [0, 0, 1, 1], [], []>} : vector<8x24xbf16>, vector<24x32xbf16>, vector<8x32xf32> -> vector<8x32xf32>
      %c0_59 = arith.constant 0 : index
      %c0_60 = arith.constant 0 : index
      %100 = vector.load %arg7[%c0_59, %c0_60] : memref<1x32xf32, #tpu.memory_space<vmem>>, vector<1x32xf32>
      %101 = vector.broadcast %100 : vector<1x32xf32> to vector<8x32xf32>
      %102 = arith.addf %99, %101 : vector<8x32xf32>
      %c0_61 = arith.constant 0 : index
      %c0_62 = arith.constant 0 : index
      %103 = vector.load %arg8[%c0_61, %c0_62] : memref<24x32xbf16, #tpu.memory_space<vmem>>, vector<24x32xbf16>
      %cst_63 = arith.constant dense<0.000000e+00> : vector<8x32xf32>
      %104 = tpu.matmul %97, %103, %cst_63 {dimension_numbers = #tpu.dot_dimension_numbers<[1], [0], [0], [1], [0, 0, 1, 1], [], []>} : vector<8x24xbf16>, vector<24x32xbf16>, vector<8x32xf32> -> vector<8x32xf32>
      %c0_64 = arith.constant 0 : index
      %c0_65 = arith.constant 0 : index
      %105 = vector.load %arg9[%c0_64, %c0_65] : memref<1x32xf32, #tpu.memory_space<vmem>>, vector<1x32xf32>
      %106 = vector.broadcast %105 : vector<1x32xf32> to vector<8x32xf32>
      %107 = arith.addf %104, %106 : vector<8x32xf32>
      %108 = arith.truncf %102 : vector<8x32xf32> to vector<8x32xbf16>
      %c0_66 = arith.constant 0 : index
      %c0_67 = arith.constant 0 : index
      %109 = vector.load %arg13[%c0_66, %c0_67] : memref<8x32xbf16, #tpu.memory_space<vmem>>, vector<8x32xbf16>
      tpu.vector_store %arg13[%c0_66, %c0_67], %108 {strides = array<i32>} : memref<8x32xbf16, #tpu.memory_space<vmem>>, vector<8x32xbf16>,
      %110 = arith.truncf %107 : vector<8x32xf32> to vector<8x32xbf16>
      %c0_68 = arith.constant 0 : index
      %c0_69 = arith.constant 0 : index
      %111 = vector.load %arg14[%c0_68, %c0_69] : memref<8x32xbf16, #tpu.memory_space<vmem>>, vector<8x32xbf16>
      tpu.vector_store %arg14[%c0_68, %c0_69], %110 {strides = array<i32>} : memref<8x32xbf16, #tpu.memory_space<vmem>>, vector<8x32xbf16>,
    } else {
    }
    %c0 = arith.constant 0 : index
    %c0_1 = arith.constant 0 : index
    %c0_2 = arith.constant 0 : index
    %3 = vector.load %arg2[%c0, %c0_1, %c0_2] : memref<1x16x32xbf16, #tpu.memory_space<vmem>>, vector<1x16x32xbf16>
    %4 = vector.shape_cast %3 : vector<1x16x32xbf16> to vector<16x32xbf16>
    %c0_3 = arith.constant 0 : index
    %c0_4 = arith.constant 0 : index
    %5 = vector.load %arg4[%c0_3, %c0_4] : memref<32x32xbf16, #tpu.memory_space<vmem>>, vector<32x32xbf16>
    %cst = arith.constant dense<0.000000e+00> : vector<16x32xf32>
    %6 = tpu.matmul %4, %5, %cst {dimension_numbers = #tpu.dot_dimension_numbers<[1], [0], [0], [1], [0, 0, 1, 1], [], []>} : vector<16x32xbf16>, vector<32x32xbf16>, vector<16x32xf32> -> vector<16x32xf32>
    %c0_5 = arith.constant 0 : index
    %c0_6 = arith.constant 0 : index
    %7 = vector.load %arg5[%c0_5, %c0_6] : memref<1x32xf32, #tpu.memory_space<vmem>>, vector<1x32xf32>
    %8 = vector.broadcast %7 : vector<1x32xf32> to vector<16x32xf32>
    %9 = arith.addf %6, %8 : vector<16x32xf32>
    %10 = arith.truncf %9 : vector<16x32xf32> to vector<16x32xbf16>
    %11 = vector.extract_strided_slice %10 {offsets = [0, 0], sizes = [16, 8], strides = [1, 1]} : vector<16x32xbf16> to vector<16x8xbf16>
    %c0_7 = arith.constant 0 : index
    %c0_8 = arith.constant 0 : index
    %12 = vector.load %arg13[%c0_7, %c0_8] : memref<8x32xbf16, #tpu.memory_space<vmem>>, vector<8x8xbf16>
    %c0_9 = arith.constant 0 : index
    %c0_10 = arith.constant 0 : index
    %13 = vector.load %arg14[%c0_9, %c0_10] : memref<8x32xbf16, #tpu.memory_space<vmem>>, vector<8x8xbf16>
    %cst_11 = arith.constant dense<0.000000e+00> : vector<16x8xf32>
    %14 = tpu.matmul %11, %12, %cst_11 {dimension_numbers = #tpu.dot_dimension_numbers<[1], [1], [0], [0], [0, 0, 1, 0], [], []>} : vector<16x8xbf16>, vector<8x8xbf16>, vector<16x8xf32> -> vector<16x8xf32>
    %cst_12 = arith.constant dense<0xFF800000> : vector<16xf32>
    %15 = vector.multi_reduction <maximumf>, %14, %cst_12 [1] : vector<16x8xf32> to vector<16xf32>
    %16 = vector.shape_cast %15 : vector<16xf32> to vector<16x1xf32>
    %17 = vector.broadcast %16 : vector<16x1xf32> to vector<16x8xf32>
    %18 = arith.subf %14, %17 : vector<16x8xf32>
    %19 = math.exp %18 : vector<16x8xf32>
    %cst_13 = arith.constant dense<0.000000e+00> : vector<16xf32>
    %20 = vector.multi_reduction <add>, %19, %cst_13 [1] : vector<16x8xf32> to vector<16xf32>
    %21 = vector.shape_cast %20 : vector<16xf32> to vector<16x1xf32>
    %22 = arith.truncf %19 : vector<16x8xf32> to vector<16x8xbf16>
    %cst_14 = arith.constant dense<0.000000e+00> : vector<16x8xf32>
    %23 = tpu.matmul %22, %13, %cst_14 {dimension_numbers = #tpu.dot_dimension_numbers<[1], [0], [0], [1], [0, 0, 1, 1], [], []>} : vector<16x8xbf16>, vector<8x8xbf16>, vector<16x8xf32> -> vector<16x8xf32>
    %24 = tpu.reciprocal %21 {approx = true} : vector<16x1xf32> -> vector<16x1xf32>
    %25 = vector.broadcast %24 : vector<16x1xf32> to vector<16x8xf32>
    %26 = arith.mulf %23, %25 : vector<16x8xf32>
    %27 = arith.truncf %26 : vector<16x8xf32> to vector<16x8xbf16>
    %c0_15 = arith.constant 0 : index
    %c0_16 = arith.constant 0 : index
    %28 = vector.load %arg10[%c0_15, %c0_16] : memref<32x32xbf16, #tpu.memory_space<vmem>>, vector<8x32xbf16>
    %cst_17 = arith.constant dense<0.000000e+00> : vector<16x32xf32>
    %29 = tpu.matmul %27, %28, %cst_17 {dimension_numbers = #tpu.dot_dimension_numbers<[1], [0], [0], [1], [0, 0, 1, 1], [], []>} : vector<16x8xbf16>, vector<8x32xbf16>, vector<16x32xf32> -> vector<16x32xf32>
    %30 = vector.extract_strided_slice %10 {offsets = [0, 8], sizes = [16, 8], strides = [1, 1]} : vector<16x32xbf16> to vector<16x8xbf16>
    %c0_18 = arith.constant 0 : index
    %c8 = arith.constant 8 : index
    %31 = vector.load %arg13[%c0_18, %c8] : memref<8x32xbf16, #tpu.memory_space<vmem>>, vector<8x8xbf16>
    %c0_19 = arith.constant 0 : index
    %c8_20 = arith.constant 8 : index
    %32 = vector.load %arg14[%c0_19, %c8_20] : memref<8x32xbf16, #tpu.memory_space<vmem>>, vector<8x8xbf16>
    %cst_21 = arith.constant dense<0.000000e+00> : vector<16x8xf32>
    %33 = tpu.matmul %30, %31, %cst_21 {dimension_numbers = #tpu.dot_dimension_numbers<[1], [1], [0], [0], [0, 0, 1, 0], [], []>} : vector<16x8xbf16>, vector<8x8xbf16>, vector<16x8xf32> -> vector<16x8xf32>
    %cst_22 = arith.constant dense<0xFF800000> : vector<16xf32>
    %34 = vector.multi_reduction <maximumf>, %33, %cst_22 [1] : vector<16x8xf32> to vector<16xf32>
    %35 = vector.shape_cast %34 : vector<16xf32> to vector<16x1xf32>
    %36 = vector.broadcast %35 : vector<16x1xf32> to vector<16x8xf32>
    %37 = arith.subf %33, %36 : vector<16x8xf32>
    %38 = math.exp %37 : vector<16x8xf32>
    %cst_23 = arith.constant dense<0.000000e+00> : vector<16xf32>
    %39 = vector.multi_reduction <add>, %38, %cst_23 [1] : vector<16x8xf32> to vector<16xf32>
    %40 = vector.shape_cast %39 : vector<16xf32> to vector<16x1xf32>
    %41 = arith.truncf %38 : vector<16x8xf32> to vector<16x8xbf16>
    %cst_24 = arith.constant dense<0.000000e+00> : vector<16x8xf32>
    %42 = tpu.matmul %41, %32, %cst_24 {dimension_numbers = #tpu.dot_dimension_numbers<[1], [0], [0], [1], [0, 0, 1, 1], [], []>} : vector<16x8xbf16>, vector<8x8xbf16>, vector<16x8xf32> -> vector<16x8xf32>
    %43 = tpu.reciprocal %40 {approx = true} : vector<16x1xf32> -> vector<16x1xf32>
    %44 = vector.broadcast %43 : vector<16x1xf32> to vector<16x8xf32>
    %45 = arith.mulf %42, %44 : vector<16x8xf32>
    %46 = arith.truncf %45 : vector<16x8xf32> to vector<16x8xbf16>
    %c8_25 = arith.constant 8 : index
    %c0_26 = arith.constant 0 : index
    %47 = vector.load %arg10[%c8_25, %c0_26] : memref<32x32xbf16, #tpu.memory_space<vmem>>, vector<8x32xbf16>
    %cst_27 = arith.constant dense<0.000000e+00> : vector<16x32xf32>
    %48 = tpu.matmul %46, %47, %cst_27 {dimension_numbers = #tpu.dot_dimension_numbers<[1], [0], [0], [1], [0, 0, 1, 1], [], []>} : vector<16x8xbf16>, vector<8x32xbf16>, vector<16x32xf32> -> vector<16x32xf32>
    %49 = arith.addf %29, %48 : vector<16x32xf32>
    %50 = vector.extract_strided_slice %10 {offsets = [0, 16], sizes = [16, 8], strides = [1, 1]} : vector<16x32xbf16> to vector<16x8xbf16>
    %c0_28 = arith.constant 0 : index
    %c16 = arith.constant 16 : index
    %51 = vector.load %arg13[%c0_28, %c16] : memref<8x32xbf16, #tpu.memory_space<vmem>>, vector<8x8xbf16>
    %c0_29 = arith.constant 0 : index
    %c16_30 = arith.constant 16 : index
    %52 = vector.load %arg14[%c0_29, %c16_30] : memref<8x32xbf16, #tpu.memory_space<vmem>>, vector<8x8xbf16>
    %cst_31 = arith.constant dense<0.000000e+00> : vector<16x8xf32>
    %53 = tpu.matmul %50, %51, %cst_31 {dimension_numbers = #tpu.dot_dimension_numbers<[1], [1], [0], [0], [0, 0, 1, 0], [], []>} : vector<16x8xbf16>, vector<8x8xbf16>, vector<16x8xf32> -> vector<16x8xf32>
    %cst_32 = arith.constant dense<0xFF800000> : vector<16xf32>
    %54 = vector.multi_reduction <maximumf>, %53, %cst_32 [1] : vector<16x8xf32> to vector<16xf32>
    %55 = vector.shape_cast %54 : vector<16xf32> to vector<16x1xf32>
    %56 = vector.broadcast %55 : vector<16x1xf32> to vector<16x8xf32>
    %57 = arith.subf %53, %56 : vector<16x8xf32>
    %58 = math.exp %57 : vector<16x8xf32>
    %cst_33 = arith.constant dense<0.000000e+00> : vector<16xf32>
    %59 = vector.multi_reduction <add>, %58, %cst_33 [1] : vector<16x8xf32> to vector<16xf32>
    %60 = vector.shape_cast %59 : vector<16xf32> to vector<16x1xf32>
    %61 = arith.truncf %58 : vector<16x8xf32> to vector<16x8xbf16>
    %cst_34 = arith.constant dense<0.000000e+00> : vector<16x8xf32>
    %62 = tpu.matmul %61, %52, %cst_34 {dimension_numbers = #tpu.dot_dimension_numbers<[1], [0], [0], [1], [0, 0, 1, 1], [], []>} : vector<16x8xbf16>, vector<8x8xbf16>, vector<16x8xf32> -> vector<16x8xf32>
    %63 = tpu.reciprocal %60 {approx = true} : vector<16x1xf32> -> vector<16x1xf32>
    %64 = vector.broadcast %63 : vector<16x1xf32> to vector<16x8xf32>
    %65 = arith.mulf %62, %64 : vector<16x8xf32>
    %66 = arith.truncf %65 : vector<16x8xf32> to vector<16x8xbf16>
    %c16_35 = arith.constant 16 : index
    %c0_36 = arith.constant 0 : index
    %67 = vector.load %arg10[%c16_35, %c0_36] : memref<32x32xbf16, #tpu.memory_space<vmem>>, vector<8x32xbf16>
    %cst_37 = arith.constant dense<0.000000e+00> : vector<16x32xf32>
    %68 = tpu.matmul %66, %67, %cst_37 {dimension_numbers = #tpu.dot_dimension_numbers<[1], [0], [0], [1], [0, 0, 1, 1], [], []>} : vector<16x8xbf16>, vector<8x32xbf16>, vector<16x32xf32> -> vector<16x32xf32>
    %69 = arith.addf %49, %68 : vector<16x32xf32>
    %70 = vector.extract_strided_slice %10 {offsets = [0, 24], sizes = [16, 8], strides = [1, 1]} : vector<16x32xbf16> to vector<16x8xbf16>
    %c0_38 = arith.constant 0 : index
    %c24 = arith.constant 24 : index
    %71 = vector.load %arg13[%c0_38, %c24] : memref<8x32xbf16, #tpu.memory_space<vmem>>, vector<8x8xbf16>
    %c0_39 = arith.constant 0 : index
    %c24_40 = arith.constant 24 : index
    %72 = vector.load %arg14[%c0_39, %c24_40] : memref<8x32xbf16, #tpu.memory_space<vmem>>, vector<8x8xbf16>
    %cst_41 = arith.constant dense<0.000000e+00> : vector<16x8xf32>
    %73 = tpu.matmul %70, %71, %cst_41 {dimension_numbers = #tpu.dot_dimension_numbers<[1], [1], [0], [0], [0, 0, 1, 0], [], []>} : vector<16x8xbf16>, vector<8x8xbf16>, vector<16x8xf32> -> vector<16x8xf32>
    %cst_42 = arith.constant dense<0xFF800000> : vector<16xf32>
    %74 = vector.multi_reduction <maximumf>, %73, %cst_42 [1] : vector<16x8xf32> to vector<16xf32>
    %75 = vector.shape_cast %74 : vector<16xf32> to vector<16x1xf32>
    %76 = vector.broadcast %75 : vector<16x1xf32> to vector<16x8xf32>
    %77 = arith.subf %73, %76 : vector<16x8xf32>
    %78 = math.exp %77 : vector<16x8xf32>
    %cst_43 = arith.constant dense<0.000000e+00> : vector<16xf32>
    %79 = vector.multi_reduction <add>, %78, %cst_43 [1] : vector<16x8xf32> to vector<16xf32>
    %80 = vector.shape_cast %79 : vector<16xf32> to vector<16x1xf32>
    %81 = arith.truncf %78 : vector<16x8xf32> to vector<16x8xbf16>
    %cst_44 = arith.constant dense<0.000000e+00> : vector<16x8xf32>
    %82 = tpu.matmul %81, %72, %cst_44 {dimension_numbers = #tpu.dot_dimension_numbers<[1], [0], [0], [1], [0, 0, 1, 1], [], []>} : vector<16x8xbf16>, vector<8x8xbf16>, vector<16x8xf32> -> vector<16x8xf32>
    %83 = tpu.reciprocal %80 {approx = true} : vector<16x1xf32> -> vector<16x1xf32>
    %84 = vector.broadcast %83 : vector<16x1xf32> to vector<16x8xf32>
    %85 = arith.mulf %82, %84 : vector<16x8xf32>
    %86 = arith.truncf %85 : vector<16x8xf32> to vector<16x8xbf16>
    %c24_45 = arith.constant 24 : index
    %c0_46 = arith.constant 0 : index
    %87 = vector.load %arg10[%c24_45, %c0_46] : memref<32x32xbf16, #tpu.memory_space<vmem>>, vector<8x32xbf16>
    %cst_47 = arith.constant dense<0.000000e+00> : vector<16x32xf32>
    %88 = tpu.matmul %86, %87, %cst_47 {dimension_numbers = #tpu.dot_dimension_numbers<[1], [0], [0], [1], [0, 0, 1, 1], [], []>} : vector<16x8xbf16>, vector<8x32xbf16>, vector<16x32xf32> -> vector<16x32xf32>
    %89 = arith.addf %69, %88 : vector<16x32xf32>
    %c0_48 = arith.constant 0 : index
    %c0_49 = arith.constant 0 : index
    %90 = vector.load %arg11[%c0_48, %c0_49] : memref<1x32xf32, #tpu.memory_space<vmem>>, vector<1x32xf32>
    %91 = vector.broadcast %90 : vector<1x32xf32> to vector<16x32xf32>
    %92 = arith.addf %89, %91 : vector<16x32xf32>
    %c0_50 = arith.constant 0 : index
    %c0_51 = arith.constant 0 : index
    %c0_52 = arith.constant 0 : index
    %93 = vector.load %arg12[%c0_50, %c0_51, %c0_52] : memref<1x16x32xf32, #tpu.memory_space<vmem>>, vector<1x16x32xf32>
    %94 = vector.shape_cast %93 : vector<1x16x32xf32> to vector<16x32xf32>
    %95 = vector.shape_cast %92 : vector<16x32xf32> to vector<1x16x32xf32>
    tpu.vector_store %arg12[%c0_50, %c0_51, %c0_52], %95 {strides = array<i32>} : memref<1x16x32xf32, #tpu.memory_space<vmem>>, vector<1x16x32xf32>,
    return
  }
  func.func @transform_0(%arg0: i32, %arg1: i32) -> (i32, i32, i32) {
    %c0_i32 = arith.constant 0 : i32
    %c0_i32_0 = arith.constant 0 : i32
    return %arg0, %arg1, %c0_i32 : i32, i32, i32
  }
  func.func @transform_1(%arg0: i32, %arg1: i32) -> (i32, i32, i32) {
    %c0_i32 = arith.constant 0 : i32
    %c0_i32_0 = arith.constant 0 : i32
    %c0_i32_1 = arith.constant 0 : i32
    return %arg0, %c0_i32, %c0_i32_0 : i32, i32, i32
  }
  func.func @transform_2(%arg0: i32, %arg1: i32) -> (i32, i32) {
    %c0_i32 = arith.constant 0 : i32
    %c0_i32_0 = arith.constant 0 : i32
    %c0_i32_1 = arith.constant 0 : i32
    return %c0_i32, %c0_i32_0 : i32, i32
  }
  func.func @transform_3(%arg0: i32, %arg1: i32) -> (i32, i32) {
    %c0_i32 = arith.constant 0 : i32
    %c0_i32_0 = arith.constant 0 : i32
    %c0_i32_1 = arith.constant 0 : i32
    return %c0_i32, %c0_i32_0 : i32, i32
  }
  func.func @transform_4(%arg0: i32, %arg1: i32) -> (i32, i32) {
    %c0_i32 = arith.constant 0 : i32
    %c0_i32_0 = arith.constant 0 : i32
    %c0_i32_1 = arith.constant 0 : i32
    return %c0_i32, %c0_i32_0 : i32, i32
  }
  func.func @transform_5(%arg0: i32, %arg1: i32) -> (i32, i32) {
    %c0_i32 = arith.constant 0 : i32
    %c0_i32_0 = arith.constant 0 : i32
    %c0_i32_1 = arith.constant 0 : i32
    return %c0_i32, %c0_i32_0 : i32, i32
  }
  func.func @transform_6(%arg0: i32, %arg1: i32) -> (i32, i32) {
    %c0_i32 = arith.constant 0 : i32
    %c0_i32_0 = arith.constant 0 : i32
    %c0_i32_1 = arith.constant 0 : i32
    return %c0_i32, %c0_i32_0 : i32, i32
  }
  func.func @transform_7(%arg0: i32, %arg1: i32) -> (i32, i32) {
    %c0_i32 = arith.constant 0 : i32
    %c0_i32_0 = arith.constant 0 : i32
    %c0_i32_1 = arith.constant 0 : i32
    return %c0_i32, %c0_i32_0 : i32, i32
  }
  func.func @transform_8(%arg0: i32, %arg1: i32) -> (i32, i32) {
    %c0_i32 = arith.constant 0 : i32
    %c0_i32_0 = arith.constant 0 : i32
    %c0_i32_1 = arith.constant 0 : i32
    return %c0_i32, %c0_i32_0 : i32, i32
  }
  func.func @transform_9(%arg0: i32, %arg1: i32) -> (i32, i32) {
    %c0_i32 = arith.constant 0 : i32
    %c0_i32_0 = arith.constant 0 : i32
    %c0_i32_1 = arith.constant 0 : i32
    return %c0_i32, %c0_i32_0 : i32, i32
  }
  func.func @transform_10(%arg0: i32, %arg1: i32) -> (i32, i32, i32) {
    %c0_i32 = arith.constant 0 : i32
    %c0_i32_0 = arith.constant 0 : i32
    return %arg0, %arg1, %c0_i32 : i32, i32, i32
  }
}

</mosaic_0001>

<llo_original>
// kernel: tpu_custom_call.1
$region0: #{tpu_custom_call.1}
  #allocation0 [shape = 'u32[]', space=smem, size = 0x4, offset = 0x4, fixed_abs, tag = 'smem constant byte address 0x4 - core index']
  #allocation1 [shape = 'u32[72,128]{1,0:T(1,128)}', space=vmem, size = 0x9000, scoped, tag = 'internal scratch']
  #allocation2 [shape = 'bf16[8,32]{1,0:T(8,128)(2,1)}', space=vmem, size = 0x800, scoped, tag = 'scratch operand']
  #allocation3 [shape = 'bf16[8,32]{1,0:T(8,128)(2,1)}', space=vmem, size = 0x800, scoped, tag = 'scratch operand']
  %s0 = inlined_call_operand.hbm [shape: bf16[2,16,32], index: 0, kind: input, shape index: {}]
  %s1 = inlined_call_operand.hbm [shape: bf16[2,8,24], index: 1, kind: input, shape index: {}]
  %s2 = inlined_call_operand.hbm [shape: bf16[32,32], index: 2, kind: input, shape index: {}]
  %s3 = inlined_call_operand.vmem [shape: f32[1,32], index: 3, kind: input, shape index: {}]
  %s4 = inlined_call_operand.hbm [shape: bf16[24,32], index: 4, kind: input, shape index: {}]
  %s5 = inlined_call_operand.vmem [shape: f32[1,32], index: 5, kind: input, shape index: {}]
  %s6 = inlined_call_operand.hbm [shape: bf16[24,32], index: 6, kind: input, shape index: {}]
  %s7 = inlined_call_operand.vmem [shape: f32[1,32], index: 7, kind: input, shape index: {}]
  %s8 = inlined_call_operand.hbm [shape: bf16[32,32], index: 8, kind: input, shape index: {}]
  %s9 = inlined_call_operand.vmem [shape: f32[1,32], index: 9, kind: input, shape index: {}]
  %s10 = inlined_call_operand.hbm [shape: f32[2,16,32], index: 10, kind: output, shape index: {}]
  %s11 = sld [smem:[#allocation0]]
  $region101: #{tpu_custom_call.1} parent=0
    _
  %s13 = ssub.s32 1, %s11
  %s14 = scalar_select 0, %s13, %s11
  $region1: #{tpu_custom_call.1} parent=0
    #allocation4 [shape = 'u8[8192]{0}', space=vmem, size = 0x2000, scoped, tag = 'input window, operand 0']
    #allocation5 [shape = 's32[2]{0}', space=sflag, size = 0x8, scoped, tag = 'scoped memory for tpu_custom_call.1']
    #allocation6 [shape = 's32[2]{0}', space=sflag, size = 0x8, scoped, tag = 'scoped memory for tpu_custom_call.1']
    #allocation7 [shape = 'u8[4096]{0}', space=vmem, size = 0x1000, scoped, tag = 'input window, operand 1']
    #allocation8 [shape = 's32[2]{0}', space=sflag, size = 0x8, scoped, tag = 'scoped memory for tpu_custom_call.1']
    #allocation9 [shape = 'u8[8192]{0}', space=vmem, size = 0x2000, scoped, tag = 'input window, operand 2, single buffered']
    #allocation10 [shape = 'u8[6144]{0}', space=vmem, size = 0x1800, scoped, tag = 'input window, operand 4, single buffered']
    #allocation11 [shape = 's32[1]{0}', space=sflag, size = 0x4, scoped, tag = 'scoped memory for tpu_custom_call.1']
    #allocation12 [shape = 'u8[6144]{0}', space=vmem, size = 0x1800, scoped, tag = 'input window, operand 6, single buffered']
    #allocation13 [shape = 'u8[8192]{0}', space=vmem, size = 0x2000, scoped, tag = 'input window, operand 8, single buffered']
    #allocation14 [shape = 's32[1]{0}', space=sflag, size = 0x4, scoped, tag = 'scoped memory for tpu_custom_call.1']
    #allocation15 [shape = 'u8[16384]{0}', space=vmem, size = 0x4000, scoped, tag = 'output window, operand 0']
    %15 = vsyncpa [#allocation5], 0
    %s16 = scalar_lea.sflag [#allocation5], 1
    %17 = vsyncpa %s16, 0
    %18 = vsyncpa [#allocation8], 0
    %s19 = scalar_lea.sflag [#allocation8], 1
    %20 = vsyncpa %s19, 0
    %21 = vsyncpa [#allocation11], 0
    %22 = vsyncpa [#allocation14], 0
    %23 = vsyncpa [#allocation6], 0
    %s24 = scalar_lea.sflag [#allocation6], 1
    %25 = vsyncpa %s24, 0
    loop: start=0, step=1, limit=4
    $region2: #{tpu_custom_call.1} parent=1 // loop_pre_header
      _
    $region3: #{tpu_custom_call.1} parent=1 // loop_header
      %s27 = sphi 0, %s31
      %p28 = scmp.ge.s32.totalorder %s27, 4
      %s34 = sphi 0, %s46
      %s35 = sphi 0, %s42
      %s36 = sphi 0, %s34
      %s37 = sphi 0, %s35
      %s38 = sphi 0, %s36
      %s39 = sphi 0, %s37
      %s51 = sphi 0, %s53
      %s54 = sphi 0, %s51
      %s55 = sphi 0, %s54
      %s71 = sphi 0, %s55
      %s77 = sphi 0, %s79
      %s80 = sphi 0, %s77
      %s81 = sphi 0, %s80
      %s97 = sphi 0, %s81
      %s101 = sphi 0, %s101
      %s103 = sphi 0, %s101
      %s104 = sphi 0, %s103
      %s118 = sphi 0, %s104
      %s122 = sphi 0, %s122
      %s124 = sphi 0, %s122
      %s125 = sphi 0, %s124
      %s139 = sphi 0, %s125
      %s143 = sphi 0, %s143
      %s145 = sphi 0, %s143
      %s146 = sphi 0, %s145
      %s160 = sphi 0, %s146
      %s164 = sphi 0, %s164
      %s166 = sphi 0, %s164
      %s167 = sphi 0, %s166
      %s181 = sphi 0, %s167
      %s185 = sphi 0, %s185
      %s187 = sphi 0, %s185
      %s188 = sphi 0, %s187
      %s202 = sphi 0, %s188
      %s206 = sphi 0, %s206
      %s208 = sphi 0, %s206
      %s209 = sphi 0, %s208
      %s223 = sphi 0, %s209
      %s227 = sphi 0, %s227
      %s229 = sphi 0, %s227
      %s230 = sphi 0, %s229
      %s244 = sphi 0, %s230
      %s248 = sphi 0, %s248
      %s250 = sphi 0, %s248
      %s251 = sphi 0, %s250
      %s265 = sphi 0, %s251
      %s273 = sphi 0, %s275
      %s276 = sphi 0, %s273
      %s277 = sphi 0, %s276
      %s293 = sphi 0, %s277
    $region4: #{tpu_custom_call.1} parent=1 // loop_header_branch
      %30 = sbr.rel (%p28) target = $region8
    $region5: #{tpu_custom_call.1} parent=1 // loop_body
      %s32 = ssub.s32 %s27, 1
      %s33 = ssub.s32 %s27, 2
      %s40 = sadd.s32 1, %s35
      %p41 = scmp.ge.s32.totalorder %s40, 1
      %s42 = scalar_select %p41, 0, %s40
      %s43 = sadd.s32 1, %s34
      %s44 = scalar_select %p41, %s43, %s34
      %p45 = scmp.ge.s32.totalorder %s44, 2
      %s46 = scalar_select %p45, 0, %s44
      %s47 = ssub.s32 %s34, %s46
      %s48 = ssub.s32 %s35, %s42
      %s49 = sor.u32 %s47, %s48
      %p50 = scmp.eq.s32.totalorder %s49, 0
      %s52 = sadd.s32 %s51, 1
      %s53 = scalar_select %p50, %s51, %s52
      %p56 = pneg %p50
      %p57 = scmp.eq.s32.totalorder %s27, 1
      %p58 = por %p56, %p57
      %p59 = scmp.ne.s32.totalorder %s51, %s54
      %p60 = scmp.eq.s32.totalorder %s27, 0
      %p61 = por %p59, %p60
      %p62 = scmp.ne.s32.totalorder %s51, %s54
      %p63 = scmp.eq.s32.totalorder %s32, 1
      %p64 = por %p62, %p63
      %p65 = scmp.ne.s32.totalorder %s54, %s55
      %p66 = scmp.eq.s32.totalorder %s32, 0
      %p67 = por %p65, %p66
      %p68 = scmp.ne.s32.totalorder %s54, %s55
      %p69 = scmp.eq.s32.totalorder %s33, 1
      %p70 = por %p68, %p69
      %p72 = scmp.ne.s32.totalorder %s55, %s71
      %p73 = scmp.eq.s32.totalorder %s33, 0
      %p74 = por %p72, %p73
      %s75 = ssub.s32 %s34, %s46
      %p76 = scmp.eq.s32.totalorder %s75, 0
      %s78 = sadd.s32 %s77, 1
      %s79 = scalar_select %p76, %s77, %s78
      %p82 = pneg %p76
      %p83 = scmp.eq.s32.totalorder %s27, 1
      %p84 = por %p82, %p83
      %p85 = scmp.ne.s32.totalorder %s77, %s80
      %p86 = scmp.eq.s32.totalorder %s27, 0
      %p87 = por %p85, %p86
      %p88 = scmp.ne.s32.totalorder %s77, %s80
      %p89 = scmp.eq.s32.totalorder %s32, 1
      %p90 = por %p88, %p89
      %p91 = scmp.ne.s32.totalorder %s80, %s81
      %p92 = scmp.eq.s32.totalorder %s32, 0
      %p93 = por %p91, %p92
      %p94 = scmp.ne.s32.totalorder %s80, %s81
      %p95 = scmp.eq.s32.totalorder %s33, 1
      %p96 = por %p94, %p95
      %p98 = scmp.ne.s32.totalorder %s81, %s97
      %p99 = scmp.eq.s32.totalorder %s33, 0
      %p100 = por %p98, %p99
      %s102 = sadd.s32 %s101, 1
      %p105 = scmp.eq.s32.totalorder %s27, 1
      %p106 = scmp.ne.s32.totalorder %s101, %s103
      %p107 = scmp.eq.s32.totalorder %s27, 0
      %p108 = por %p106, %p107
      %p109 = scmp.ne.s32.totalorder %s101, %s103
      %p110 = scmp.eq.s32.totalorder %s32, 1
      %p111 = por %p109, %p110
      %p112 = scmp.ne.s32.totalorder %s103, %s104
      %p113 = scmp.eq.s32.totalorder %s32, 0
      %p114 = por %p112, %p113
      %p115 = scmp.ne.s32.totalorder %s103, %s104
      %p116 = scmp.eq.s32.totalorder %s33, 1
      %p117 = por %p115, %p116
      %p119 = scmp.ne.s32.totalorder %s104, %s118
      %p120 = scmp.eq.s32.totalorder %s33, 0
      %p121 = por %p119, %p120
      %s123 = sadd.s32 %s122, 1
      %p126 = scmp.eq.s32.totalorder %s27, 1
      %p127 = scmp.ne.s32.totalorder %s122, %s124
      %p128 = scmp.eq.s32.totalorder %s27, 0
      %p129 = por %p127, %p128
      %p130 = scmp.ne.s32.totalorder %s122, %s124
      %p131 = scmp.eq.s32.totalorder %s32, 1
      %p132 = por %p130, %p131
      %p133 = scmp.ne.s32.totalorder %s124, %s125
      %p134 = scmp.eq.s32.totalorder %s32, 0
      %p135 = por %p133, %p134
      %p136 = scmp.ne.s32.totalorder %s124, %s125
      %p137 = scmp.eq.s32.totalorder %s33, 1
      %p138 = por %p136, %p137
      %p140 = scmp.ne.s32.totalorder %s125, %s139
      %p141 = scmp.eq.s32.totalorder %s33, 0
      %p142 = por %p140, %p141
      %s144 = sadd.s32 %s143, 1
      %p147 = scmp.eq.s32.totalorder %s27, 1
      %p148 = scmp.ne.s32.totalorder %s143, %s145
      %p149 = scmp.eq.s32.totalorder %s27, 0
      %p150 = por %p148, %p149
      %p151 = scmp.ne.s32.totalorder %s143, %s145
      %p152 = scmp.eq.s32.totalorder %s32, 1
      %p153 = por %p151, %p152
      %p154 = scmp.ne.s32.totalorder %s145, %s146
      %p155 = scmp.eq.s32.totalorder %s32, 0
      %p156 = por %p154, %p155
      %p157 = scmp.ne.s32.totalorder %s145, %s146
      %p158 = scmp.eq.s32.totalorder %s33, 1
      %p159 = por %p157, %p158
      %p161 = scmp.ne.s32.totalorder %s146, %s160
      %p162 = scmp.eq.s32.totalorder %s33, 0
      %p163 = por %p161, %p162
      %s165 = sadd.s32 %s164, 1
      %p168 = scmp.eq.s32.totalorder %s27, 1
      %p169 = scmp.ne.s32.totalorder %s164, %s166
      %p170 = scmp.eq.s32.totalorder %s27, 0
      %p171 = por %p169, %p170
      %p172 = scmp.ne.s32.totalorder %s164, %s166
      %p173 = scmp.eq.s32.totalorder %s32, 1
      %p174 = por %p172, %p173
      %p175 = scmp.ne.s32.totalorder %s166, %s167
      %p176 = scmp.eq.s32.totalorder %s32, 0
      %p177 = por %p175, %p176
      %p178 = scmp.ne.s32.totalorder %s166, %s167
      %p179 = scmp.eq.s32.totalorder %s33, 1
      %p180 = por %p178, %p179
      %p182 = scmp.ne.s32.totalorder %s167, %s181
      %p183 = scmp.eq.s32.totalorder %s33, 0
      %p184 = por %p182, %p183
      %s186 = sadd.s32 %s185, 1
      %p189 = scmp.eq.s32.totalorder %s27, 1
      %p190 = scmp.ne.s32.totalorder %s185, %s187
      %p191 = scmp.eq.s32.totalorder %s27, 0
      %p192 = por %p190, %p191
      %p193 = scmp.ne.s32.totalorder %s185, %s187
      %p194 = scmp.eq.s32.totalorder %s32, 1
      %p195 = por %p193, %p194
      %p196 = scmp.ne.s32.totalorder %s187, %s188
      %p197 = scmp.eq.s32.totalorder %s32, 0
      %p198 = por %p196, %p197
      %p199 = scmp.ne.s32.totalorder %s187, %s188
      %p200 = scmp.eq.s32.totalorder %s33, 1
      %p201 = por %p199, %p200
      %p203 = scmp.ne.s32.totalorder %s188, %s202
      %p204 = scmp.eq.s32.totalorder %s33, 0
      %p205 = por %p203, %p204
      %s207 = sadd.s32 %s206, 1
      %p210 = scmp.eq.s32.totalorder %s27, 1
      %p211 = scmp.ne.s32.totalorder %s206, %s208
      %p212 = scmp.eq.s32.totalorder %s27, 0
      %p213 = por %p211, %p212
      %p214 = scmp.ne.s32.totalorder %s206, %s208
      %p215 = scmp.eq.s32.totalorder %s32, 1
      %p216 = por %p214, %p215
      %p217 = scmp.ne.s32.totalorder %s208, %s209
      %p218 = scmp.eq.s32.totalorder %s32, 0
      %p219 = por %p217, %p218
      %p220 = scmp.ne.s32.totalorder %s208, %s209
      %p221 = scmp.eq.s32.totalorder %s33, 1
      %p222 = por %p220, %p221
      %p224 = scmp.ne.s32.totalorder %s209, %s223
      %p225 = scmp.eq.s32.totalorder %s33, 0
      %p226 = por %p224, %p225
      %s228 = sadd.s32 %s227, 1
      %p231 = scmp.eq.s32.totalorder %s27, 1
      %p232 = scmp.ne.s32.totalorder %s227, %s229
      %p233 = scmp.eq.s32.totalorder %s27, 0
      %p234 = por %p232, %p233
      %p235 = scmp.ne.s32.totalorder %s227, %s229
      %p236 = scmp.eq.s32.totalorder %s32, 1
      %p237 = por %p235, %p236
      %p238 = scmp.ne.s32.totalorder %s229, %s230
      %p239 = scmp.eq.s32.totalorder %s32, 0
      %p240 = por %p238, %p239
      %p241 = scmp.ne.s32.totalorder %s229, %s230
      %p242 = scmp.eq.s32.totalorder %s33, 1
      %p243 = por %p241, %p242
      %p245 = scmp.ne.s32.totalorder %s230, %s244
      %p246 = scmp.eq.s32.totalorder %s33, 0
      %p247 = por %p245, %p246
      %s249 = sadd.s32 %s248, 1
      %p252 = scmp.eq.s32.totalorder %s27, 1
      %p253 = scmp.ne.s32.totalorder %s248, %s250
      %p254 = scmp.eq.s32.totalorder %s27, 0
      %p255 = por %p253, %p254
      %p256 = scmp.ne.s32.totalorder %s248, %s250
      %p257 = scmp.eq.s32.totalorder %s32, 1
      %p258 = por %p256, %p257
      %p259 = scmp.ne.s32.totalorder %s250, %s251
      %p260 = scmp.eq.s32.totalorder %s32, 0
      %p261 = por %p259, %p260
      %p262 = scmp.ne.s32.totalorder %s250, %s251
      %p263 = scmp.eq.s32.totalorder %s33, 1
      %p264 = por %p262, %p263
      %p266 = scmp.ne.s32.totalorder %s251, %s265
      %p267 = scmp.eq.s32.totalorder %s33, 0
      %p268 = por %p266, %p267
      %s269 = ssub.s32 %s34, %s46
      %s270 = ssub.s32 %s35, %s42
      %s271 = sor.u32 %s269, %s270
      %p272 = scmp.eq.s32.totalorder %s271, 0
      %s274 = sadd.s32 %s273, 1
      %s275 = scalar_select %p272, %s273, %s274
      %p278 = pneg %p272
      %p279 = scmp.eq.s32.totalorder %s27, 1
      %p280 = por %p278, %p279
      %p281 = scmp.ne.s32.totalorder %s273, %s276
      %p282 = scmp.eq.s32.totalorder %s27, 0
      %p283 = por %p281, %p282
      %p284 = scmp.ne.s32.totalorder %s273, %s276
      %p285 = scmp.eq.s32.totalorder %s32, 1
      %p286 = por %p284, %p285
      %p287 = scmp.ne.s32.totalorder %s276, %s277
      %p288 = scmp.eq.s32.totalorder %s32, 0
      %p289 = por %p287, %p288
      %p290 = scmp.ne.s32.totalorder %s276, %s277
      %p291 = scmp.eq.s32.totalorder %s33, 1
      %p292 = por %p290, %p291
      %p294 = scmp.ne.s32.totalorder %s277, %s293
      %p295 = scmp.eq.s32.totalorder %s33, 0
      %p296 = por %p294, %p295
      %p297 = scmp.le.s32.totalorder 1, %s27
      %p298 = scmp.lt.s32.totalorder %s27, 3
      %p299 = pnand %p297, %p298
      %p300 = pneg %p299
      // Predicated region
      $region9: #{tpu_custom_call.1} parent=5 // pred_check
        _
      $region10: #{tpu_custom_call.1} parent=5 // pred_check_branch
        %302 = sbr.rel (%p299) target = $region12
      $region11: #{tpu_custom_call.1} parent=5 // pred_region
        %s303 = ssub.s32 %s27, 1
        // Predicated region
        $region13: #{tpu_custom_call.1} parent=11 // pred_check
          %p304 = pneg %p114
        $region14: #{tpu_custom_call.1} parent=11 // pred_check_branch
          %306 = sbr.rel (%p304) target = $region16
        $region15: #{tpu_custom_call.1} parent=11 // pred_region
          %308 = vsyncadd [#allocation8], 0
          %s309 = sshll.u32 %s2, 4
          %s310 = int_to_ptr.hbm [resolvable:$true] %s309
          %s311 = sshll.u32 [#allocation9], 4
          %s312 = int_to_ptr.vmem [resolvable:$true] %s311
          %317 = dma.hbm_to_vmem [thread:$0]  %s310, 256, %s312, [#allocation8], 64, 64, 4
        $region16: #{tpu_custom_call.1} parent=11 // pred_fallthru
          _
        // Predicated region
        $region17: #{tpu_custom_call.1} parent=11 // pred_check
          %p318 = pneg %p135
        $region18: #{tpu_custom_call.1} parent=11 // pred_check_branch
          %320 = sbr.rel (%p318) target = $region20
        $region19: #{tpu_custom_call.1} parent=11 // pred_region
          _
        $region20: #{tpu_custom_call.1} parent=11 // pred_fallthru
          _
        // Predicated region
        $region21: #{tpu_custom_call.1} parent=11 // pred_check
          %p321 = pneg %p156
        $region22: #{tpu_custom_call.1} parent=11 // pred_check_branch
          %323 = sbr.rel (%p321) target = $region24
        $region23: #{tpu_custom_call.1} parent=11 // pred_region
          %325 = vsyncadd [#allocation11], 0
          %s326 = sshll.u32 %s4, 4
          %s327 = int_to_ptr.hbm [resolvable:$true] %s326
          %s328 = sshll.u32 [#allocation10], 4
          %s329 = int_to_ptr.vmem [resolvable:$true] %s328
          %334 = dma.hbm_to_vmem [thread:$0]  %s327, 192, %s329, [#allocation11], 64, 64, 4
        $region24: #{tpu_custom_call.1} parent=11 // pred_fallthru
          _
        // Predicated region
        $region25: #{tpu_custom_call.1} parent=11 // pred_check
          %p335 = pneg %p177
        $region26: #{tpu_custom_call.1} parent=11 // pred_check_branch
          %337 = sbr.rel (%p335) target = $region28
        $region27: #{tpu_custom_call.1} parent=11 // pred_region
          _
        $region28: #{tpu_custom_call.1} parent=11 // pred_fallthru
          _
        // Predicated region
        $region29: #{tpu_custom_call.1} parent=11 // pred_check
          %p338 = pneg %p198
        $region30: #{tpu_custom_call.1} parent=11 // pred_check_branch
          %340 = sbr.rel (%p338) target = $region32
        $region31: #{tpu_custom_call.1} parent=11 // pred_region
          %342 = vsyncadd [#allocation11], 0
          %s343 = sshll.u32 %s6, 4
          %s344 = int_to_ptr.hbm [resolvable:$true] %s343
          %s345 = sshll.u32 [#allocation12], 4
          %s346 = int_to_ptr.vmem [resolvable:$true] %s345
          %351 = dma.hbm_to_vmem [thread:$0]  %s344, 192, %s346, [#allocation11], 64, 64, 4
        $region32: #{tpu_custom_call.1} parent=11 // pred_fallthru
          _
        // Predicated region
        $region33: #{tpu_custom_call.1} parent=11 // pred_check
          %p352 = pneg %p219
        $region34: #{tpu_custom_call.1} parent=11 // pred_check_branch
          %354 = sbr.rel (%p352) target = $region36
        $region35: #{tpu_custom_call.1} parent=11 // pred_region
          _
        $region36: #{tpu_custom_call.1} parent=11 // pred_fallthru
          _
        // Predicated region
        $region37: #{tpu_custom_call.1} parent=11 // pred_check
          %p355 = pneg %p240
        $region38: #{tpu_custom_call.1} parent=11 // pred_check_branch
          %357 = sbr.rel (%p355) target = $region40
        $region39: #{tpu_custom_call.1} parent=11 // pred_region
          %359 = vsyncadd [#allocation14], 0
          %s360 = sshll.u32 %s8, 4
          %s361 = int_to_ptr.hbm [resolvable:$true] %s360
          %s362 = sshll.u32 [#allocation13], 4
          %s363 = int_to_ptr.vmem [resolvable:$true] %s362
          %368 = dma.hbm_to_vmem [thread:$0]  %s361, 256, %s363, [#allocation14], 64, 64, 4
        $region40: #{tpu_custom_call.1} parent=11 // pred_fallthru
          _
        // Predicated region
        $region41: #{tpu_custom_call.1} parent=11 // pred_check
          %p369 = pneg %p261
        $region42: #{tpu_custom_call.1} parent=11 // pred_check_branch
          %371 = sbr.rel (%p369) target = $region44
        $region43: #{tpu_custom_call.1} parent=11 // pred_region
          _
        $region44: #{tpu_custom_call.1} parent=11 // pred_fallthru
          _
      $region12: #{tpu_custom_call.1} parent=5 // pred_fallthru
        _
      %p372 = scmp.lt.s32.totalorder %s27, 2
      // Predicated region
      $region45: #{tpu_custom_call.1} parent=5 // pred_check
        %p373 = pneg %p372
      $region46: #{tpu_custom_call.1} parent=5 // pred_check_branch
        %375 = sbr.rel (%p373) target = $region48
      $region47: #{tpu_custom_call.1} parent=5 // pred_region
        // Predicated region
        $region49: #{tpu_custom_call.1} parent=47 // pred_check
          %p376 = pneg %p61
        $region50: #{tpu_custom_call.1} parent=47 // pred_check_branch
          %378 = sbr.rel (%p376) target = $region52
        $region51: #{tpu_custom_call.1} parent=47 // pred_region
          %s379 = sand.u32 %s51, 1
          %s380 = scalar_lea.sflag [#allocation5], %s379
          %s381 = sand.u32 %s51, 1
          %s382 = smul.addr %s381, 8
          %s383 = scalar_lea.vmem [#allocation4], %s382
          %s384 = smul.u32 2, %s35
          %386 = vsyncadd %s380, 0
          %s387 = smul.addr %s34, 2
          %s388 = sadd.s32 %s384, %s387
          %s389 = smul.addr %s388, 4
          %s390 = scalar_lea.hbm %s0, %s389
          %s391 = sshll.u32 %s390, 4
          %s392 = int_to_ptr.hbm [resolvable:$true] %s391
          %s393 = sshll.u32 %s383, 4
          %s394 = int_to_ptr.vmem [resolvable:$true] %s393
          %399 = dma.hbm_to_vmem [thread:$0]  %s392, 128, %s394, %s380, 64, 64, 4
        $region52: #{tpu_custom_call.1} parent=47 // pred_fallthru
          _
        // Predicated region
        $region53: #{tpu_custom_call.1} parent=47 // pred_check
          %p400 = pneg %p87
        $region54: #{tpu_custom_call.1} parent=47 // pred_check_branch
          %402 = sbr.rel (%p400) target = $region56
        $region55: #{tpu_custom_call.1} parent=47 // pred_region
          %s403 = sand.u32 %s27, 1
          %s404 = scalar_lea.sflag [#allocation8], %s403
          %s405 = sand.u32 %s77, 1
          %s406 = smul.addr %s405, 4
          %s407 = scalar_lea.vmem [#allocation7], %s406
          %409 = vsyncadd %s404, 0
          %s410 = smul.addr %s34, 4
          %s411 = scalar_lea.hbm %s1, %s410
          %s413 = sshll.u32 %s411, 4
          %s414 = int_to_ptr.hbm [resolvable:$true] %s413
          %s415 = sshll.u32 %s407, 4
          %s416 = int_to_ptr.vmem [resolvable:$true] %s415
          %418 = dma.hbm_to_vmem [thread:$0]  %s414, 64, %s416, %s404
        $region56: #{tpu_custom_call.1} parent=47 // pred_fallthru
          _
      $region48: #{tpu_custom_call.1} parent=5 // pred_fallthru
        _
      %p419 = scmp.le.s32.totalorder 1, %s27
      %p420 = scmp.lt.s32.totalorder %s27, 3
      %p421 = pnand %p419, %p420
      %p422 = pneg %p421
      // Predicated region
      $region57: #{tpu_custom_call.1} parent=5 // pred_check
        _
      $region58: #{tpu_custom_call.1} parent=5 // pred_check_branch
        %424 = sbr.rel (%p421) target = $region60
      $region59: #{tpu_custom_call.1} parent=5 // pred_region
        %s425 = ssub.s32 %s27, 1
        %s426 = sand.u32 %s54, 1
        %s427 = scalar_lea.sflag [#allocation5], %s426
        %s428 = sand.u32 %s54, 1
        %s429 = smul.addr %s428, 8
        %s430 = scalar_lea.vmem [#allocation4], %s429
        // Predicated region
        $region61: #{tpu_custom_call.1} parent=59 // pred_check
          %p431 = pneg %p67
        $region62: #{tpu_custom_call.1} parent=59 // pred_check_branch
          %433 = sbr.rel (%p431) target = $region64
        $region63: #{tpu_custom_call.1} parent=59 // pred_region
          %435 = dma.done %s427, 128
        $region64: #{tpu_custom_call.1} parent=59 // pred_fallthru
          _
        %s436 = sand.u32 %s32, 1
        %s437 = scalar_lea.sflag [#allocation8], %s436
        %s438 = sand.u32 %s80, 1
        %s439 = smul.addr %s438, 4
        %s440 = scalar_lea.vmem [#allocation7], %s439
        // Predicated region
        $region65: #{tpu_custom_call.1} parent=59 // pred_check
          %p441 = pneg %p93
        $region66: #{tpu_custom_call.1} parent=59 // pred_check_branch
          %443 = sbr.rel (%p441) target = $region68
        $region67: #{tpu_custom_call.1} parent=59 // pred_region
          %445 = dma.done %s437, 64
        $region68: #{tpu_custom_call.1} parent=59 // pred_fallthru
          _
        // Predicated region
        $region69: #{tpu_custom_call.1} parent=59 // pred_check
          %p446 = pneg %p114
        $region70: #{tpu_custom_call.1} parent=59 // pred_check_branch
          %448 = sbr.rel (%p446) target = $region72
        $region71: #{tpu_custom_call.1} parent=59 // pred_region
          %450 = dma.done [#allocation8], 256
        $region72: #{tpu_custom_call.1} parent=59 // pred_fallthru
          _
        // Predicated region
        $region73: #{tpu_custom_call.1} parent=59 // pred_check
          %p451 = pneg %p156
        $region74: #{tpu_custom_call.1} parent=59 // pred_check_branch
          %453 = sbr.rel (%p451) target = $region76
        $region75: #{tpu_custom_call.1} parent=59 // pred_region
          %455 = dma.done [#allocation11], 192
        $region76: #{tpu_custom_call.1} parent=59 // pred_fallthru
          _
        // Predicated region
        $region77: #{tpu_custom_call.1} parent=59 // pred_check
          %p456 = pneg %p198
        $region78: #{tpu_custom_call.1} parent=59 // pred_check_branch
          %458 = sbr.rel (%p456) target = $region80
        $region79: #{tpu_custom_call.1} parent=59 // pred_region
          %460 = dma.done [#allocation11], 192
        $region80: #{tpu_custom_call.1} parent=59 // pred_fallthru
          _
        // Predicated region
        $region81: #{tpu_custom_call.1} parent=59 // pred_check
          %p461 = pneg %p240
        $region82: #{tpu_custom_call.1} parent=59 // pred_check_branch
          %463 = sbr.rel (%p461) target = $region84
        $region83: #{tpu_custom_call.1} parent=59 // pred_region
          %465 = dma.done [#allocation14], 256
        $region84: #{tpu_custom_call.1} parent=59 // pred_fallthru
          _
        %s466 = sand.u32 %s54, 1
        %s467 = scalar_lea.sflag [#allocation5], %s466
        %s468 = sand.u32 %s54, 1
        %s469 = smul.addr %s468, 8
        %s470 = scalar_lea.vmem [#allocation4], %s469
        %p471 = pneg %p67
        %p472 = pneg %p64
        %s473 = sand.u32 %s32, 1
        %s474 = scalar_lea.sflag [#allocation8], %s473
        %s475 = sand.u32 %s80, 1
        %s476 = smul.addr %s475, 4
        %s477 = scalar_lea.vmem [#allocation7], %s476
        %p478 = pneg %p93
        %p479 = pneg %p90
        %p480 = pneg %p114
        %p481 = pneg %p111
        %p482 = pneg %p135
        %p483 = pneg %p132
        %p484 = pneg %p156
        %p485 = pneg %p153
        %p486 = pneg %p177
        %p487 = pneg %p174
        %p488 = pneg %p198
        %p489 = pneg %p195
        %p490 = pneg %p219
        %p491 = pneg %p216
        %p492 = pneg %p240
        %p493 = pneg %p237
        %p494 = pneg %p261
        %p495 = pneg %p258
        %p496 = pneg %p289
        %p497 = pneg %p286
        %s498 = sand.u32 %s276, 1
        %s499 = scalar_lea.sflag [#allocation6], %s498
        %s500 = sand.u32 %s276, 1
        %s501 = smul.addr %s500, 16
        %s502 = scalar_lea.vmem [#allocation15], %s501
        %s503 = smul.u32 2, %s37
        %s504 = smul.u32 2, %s37
        %p506 = scmp.eq.s32.totalorder %s37, 0
        // Predicated region
        $region85: #{tpu_custom_call.1} parent=59 // pred_check
          %p507 = pneg %p506
        $region86: #{tpu_custom_call.1} parent=59 // pred_check_branch
          %509 = sbr.rel (%p507) target = $region88
        $region87: #{tpu_custom_call.1} parent=59 // pred_region
          %v510 = vld [vmem:[%s440] sm:$0xf]
          %v511 = vld [vmem:[#allocation10] sm:$0xf]
          %v512 = vld [vmem:[#allocation10 + $0x4] sm:$0xf]
          %v513 = vld [vmem:[#allocation10 + $0x8] sm:$0xf]
          %v514 = vld [vmem:[%s5] sm:$0x1]
          %v516 = vperm.slane %v514, 0
          %v521 = vunpack.c.l.b16 %v511
          %v522 = vunpack.c.l.b16 %v512
          %v523 = vunpack.c.l.b16 %v513
          %v524 = vpack.c.b16 %v522, %v521
          %v525 = vpack.c.b16 %v523, %v523
          %vm527 = vcmask 195584
          %v529 = vsel %vm527, %v510, 0
          %vm531 = vcmask 1043456
          %v533 = vsel %vm531, %v525, 0
          %535 = vmatpush.bf16.msra.mxu0 0
          %536 = vmatpush.bf16.msra.mxu0 0
          %537 = vmatpush.bf16.msra.mxu0 0
          %538 = vmatpush.bf16.msra.mxu0 0
          %539 = vmatpush.bf16.msra.mxu0 0
          %540 = vmatpush.bf16.msra.mxu0 0
          %541 = vmatpush.bf16.msra.mxu0 %v533
          %542 = vmatpush.bf16.msra.mxu0 %v524
          %543 = vmatmul.bf16.gmra.mxu0 %v529
          %v544 = vpop.f32.mrf.mxu0
          %v545 = vadd.f32 %v516, %v544
          %v546 = vpop.f32.mrf.mxu0
          %547 = vdwg.mxu0
          %v548 = vld [vmem:[#allocation12] sm:$0xf]
          %v549 = vld [vmem:[#allocation12 + $0x4] sm:$0xf]
          %v550 = vld [vmem:[#allocation12 + $0x8] sm:$0xf]
          %v551 = vld [vmem:[%s7] sm:$0x1]
          %v553 = vperm.slane %v551, 0
          %v558 = vunpack.c.l.b16 %v548
          %v559 = vunpack.c.l.b16 %v549
          %v560 = vunpack.c.l.b16 %v550
          %v561 = vpack.c.b16 %v559, %v558
          %v562 = vpack.c.b16 %v560, %v560
          %v565 = vsel %vm531, %v562, 0
          %567 = vmatpush.bf16.msra.mxu0 0
          %568 = vmatpush.bf16.msra.mxu0 0
          %569 = vmatpush.bf16.msra.mxu0 0
          %570 = vmatpush.bf16.msra.mxu0 0
          %571 = vmatpush.bf16.msra.mxu0 0
          %572 = vmatpush.bf16.msra.mxu0 0
          %573 = vmatpush.bf16.msra.mxu0 %v565
          %574 = vmatpush.bf16.msra.mxu0 %v561
          %575 = vmatmul.bf16.gmra.mxu0 %v529
          %v576 = vpop.f32.mrf.mxu0
          %v577 = vadd.f32 %v553, %v576
          %v578 = vpop.f32.mrf.mxu0
          %579 = vdwg.mxu0
          %v580 = vpack.c.bf16 %v545, %v545
          %vm581 = vcmask 257024
          %582 = vst.msk [vmem:[#allocation2] sm:$0xf] %vm581, %v580
          %v583 = vpack.c.bf16 %v577, %v577
          %584 = vst.msk [vmem:[#allocation3] sm:$0xf] %vm581, %v583
        $region88: #{tpu_custom_call.1} parent=59 // pred_fallthru
          _
        %v585 = vld [vmem:[%s430] sm:$0xf]
        %v586 = vld [vmem:[%s430 + $0x4] sm:$0xf]
        %v587 = vld [vmem:[#allocation9] sm:$0xf]
        %v588 = vld [vmem:[#allocation9 + $0x4] sm:$0xf]
        %v589 = vld [vmem:[#allocation9 + $0x8] sm:$0xf]
        %v590 = vld [vmem:[#allocation9 + $0xc] sm:$0xf]
        %v591 = vld [vmem:[%s3] sm:$0x1]
        %v593 = vperm.slane %v591, 0
        %v597 = vunpack.c.l.b16 %v585
        %v598 = vunpack.c.l.b16 %v586
        %v599 = vpack.c.b16 %v598, %v597
        %v604 = vunpack.c.l.b16 %v587
        %v605 = vunpack.c.l.b16 %v588
        %v606 = vunpack.c.l.b16 %v589
        %v607 = vunpack.c.l.b16 %v590
        %v608 = vpack.c.b16 %v605, %v604
        %v609 = vpack.c.b16 %v607, %v606
        %vm612 = vcmask 261120
        %v614 = vsel %vm612, %v599, 0
        %616 = vmatpush.bf16.msra.mxu0 0
        %617 = vmatpush.bf16.msra.mxu0 0
        %618 = vmatpush.bf16.msra.mxu0 0
        %619 = vmatpush.bf16.msra.mxu0 0
        %620 = vmatpush.bf16.msra.mxu0 0
        %621 = vmatpush.bf16.msra.mxu0 0
        %622 = vmatpush.bf16.msra.mxu0 %v609
        %623 = vmatpush.bf16.msra.mxu0 %v608
        %624 = vmatmul.bf16.gmra.mxu0 %v614
        %v625 = vpop.f32.mrf.mxu0
        %v626 = vadd.f32 %v593, %v625
        %v627 = vpop.f32.mrf.mxu0
        %v628 = vadd.f32 %v593, %v627
        %629 = vdwg.mxu0
        %v630 = vpack.c.bf16 %v626, %v626
        %v631 = vpack.c.bf16 %v628, %v628
        %v632 = vld [vmem:[#allocation2] sm:$0xf]
        %v633 = vld [vmem:[#allocation3] sm:$0xf]
        %v636 = vunpack.c.l.b16 %v630
        %v637 = vunpack.c.l.b16 %v631
        %v638 = vpack.c.b16 %v637, %v636
        %vm639 = vcmask 64512
        %v641 = vsel %vm639, %v638, 0
        %v644 = vsel %vm639, %v632, 0
        %646 = vmatpush.bf16.xpose.msra.mxu0 0
        %647 = vmatpush.bf16.xpose.msra.mxu0 0
        %648 = vmatpush.bf16.xpose.msra.mxu0 0
        %649 = vmatpush.bf16.xpose.msra.mxu0 0
        %650 = vmatpush.bf16.xpose.msra.mxu0 0
        %651 = vmatpush.bf16.xpose.msra.mxu0 0
        %652 = vmatpush.bf16.xpose.msra.mxu0 0
        %653 = vmatpush.bf16.xpose.msra.mxu0 %v644
        %654 = vmatmul.bf16.gmra.mxu0 %v641
        %v655 = vpop.f32.mrf.mxu0
        %v656 = vadd.f32 0.0, %v655
        %v657 = vpop.f32.mrf.mxu0
        %v658 = vadd.f32 0.0, %v657
        %659 = vdwg.mxu0
        %v660 = vsel %vm639, %v656, -inf
        %661 = vmax.xlane.f32.xlu0 %v660
        %v662 = vpop.xlane.xlu0 %661
        %v663 = vsel %vm639, %v658, -inf
        %664 = vmax.xlane.f32.xlu0 %v663
        %v665 = vpop.xlane.xlu0 %664
        %v666 = vsub.f32 %v656, %v662
        %v667 = vsub.f32 %v658, %v665
        %v668 = vmul.f32 %v666, 1.442695
        %v669 = vpow.pop %v668
        %v670 = vmul.f32 %v667, 1.442695
        %v671 = vpow.pop %v670
        %v672 = vsel %vm639, %v669, 0.0
        %673 = vadd.xlane.f32.xlu0 %v672
        %v674 = vpop.xlane.xlu0 %673
        %v675 = vsel %vm639, %v671, 0.0
        %676 = vadd.xlane.f32.xlu0 %v675
        %v677 = vpop.xlane.xlu0 %676
        %v678 = vpack.c.bf16 %v671, %v669
        %v680 = vsel %vm639, %v678, 0
        %vm682 = vcmask 1043456
        %v684 = vsel %vm682, %v633, 0
        %686 = vmatpush.bf16.msra.mxu0 0
        %687 = vmatpush.bf16.msra.mxu0 0
        %688 = vmatpush.bf16.msra.mxu0 0
        %689 = vmatpush.bf16.msra.mxu0 0
        %690 = vmatpush.bf16.msra.mxu0 0
        %691 = vmatpush.bf16.msra.mxu0 0
        %692 = vmatpush.bf16.msra.mxu0 0
        %693 = vmatpush.bf16.msra.mxu0 %v684
        %694 = vmatmul.bf16.gmra.mxu0 %v680
        %v695 = vpop.f32.mrf.mxu0
        %v696 = vadd.f32 0.0, %v695
        %v697 = vpop.f32.mrf.mxu0
        %v698 = vadd.f32 0.0, %v697
        %699 = vdwg.mxu0
        %v700 = vrcp.pop %v674
        %v701 = vrcp.pop %v677
        %v702 = vmul.f32 %v696, %v700
        %v703 = vmul.f32 %v698, %v701
        %v704 = vpack.c.bf16 %v703, %v702
        %v705 = vld [vmem:[#allocation13] sm:$0xf]
        %706 = vrot.lane.b32.xlu0 %v638, 120
        %v707 = vpop.permute.xlu0 %706
        %v709 = vunpack.c.l.b16 %v632
        %v710 = vpack.c.b16 %v709, %v709
        %711 = vrot.lane.b32.xlu0 %v710, 120
        %v712 = vpop.permute.xlu0 %711
        %v714 = vsel %vm639, %v707, 0
        %v717 = vsel %vm639, %v712, 0
        %719 = vmatpush.bf16.xpose.msra.mxu0 0
        %720 = vmatpush.bf16.xpose.msra.mxu0 0
        %721 = vmatpush.bf16.xpose.msra.mxu0 0
        %722 = vmatpush.bf16.xpose.msra.mxu0 0
        %723 = vmatpush.bf16.xpose.msra.mxu0 0
        %724 = vmatpush.bf16.xpose.msra.mxu0 0
        %725 = vmatpush.bf16.xpose.msra.mxu0 0
        %726 = vmatpush.bf16.xpose.msra.mxu0 %v717
        %727 = vmatmul.bf16.gmra.mxu0 %v714
        %v728 = vpop.f32.mrf.mxu0
        %v729 = vadd.f32 0.0, %v728
        %v730 = vpop.f32.mrf.mxu0
        %v731 = vadd.f32 0.0, %v730
        %732 = vdwg.mxu0
        %v733 = vsel %vm639, %v729, -inf
        %734 = vmax.xlane.f32.xlu0 %v733
        %v735 = vpop.xlane.xlu0 %734
        %v736 = vsel %vm639, %v731, -inf
        %737 = vmax.xlane.f32.xlu0 %v736
        %v738 = vpop.xlane.xlu0 %737
        %v739 = vsub.f32 %v729, %v735
        %v740 = vsub.f32 %v731, %v738
        %v741 = vmul.f32 %v739, 1.442695
        %v742 = vpow.pop %v741
        %v743 = vmul.f32 %v740, 1.442695
        %v744 = vpow.pop %v743
        %v745 = vsel %vm639, %v742, 0.0
        %746 = vadd.xlane.f32.xlu0 %v745
        %v747 = vpop.xlane.xlu0 %746
        %v748 = vsel %vm639, %v744, 0.0
        %749 = vadd.xlane.f32.xlu0 %v748
        %v750 = vpop.xlane.xlu0 %749
        %v751 = vpack.c.bf16 %v744, %v742
        %v753 = vunpack.c.l.b16 %v633
        %v754 = vpack.c.b16 %v753, %v753
        %755 = vrot.lane.b32.xlu0 %v754, 120
        %v756 = vpop.permute.xlu0 %755
        %v758 = vsel %vm639, %v751, 0
        %v761 = vsel %vm682, %v756, 0
        %763 = vmatpush.bf16.msra.mxu0 0
        %764 = vmatpush.bf16.msra.mxu0 0
        %765 = vmatpush.bf16.msra.mxu0 0
        %766 = vmatpush.bf16.msra.mxu0 0
        %767 = vmatpush.bf16.msra.mxu0 0
        %768 = vmatpush.bf16.msra.mxu0 0
        %769 = vmatpush.bf16.msra.mxu0 0
        %770 = vmatpush.bf16.msra.mxu0 %v761
        %771 = vmatmul.bf16.gmra.mxu0 %v758
        %v772 = vpop.f32.mrf.mxu0
        %v773 = vadd.f32 0.0, %v772
        %v774 = vpop.f32.mrf.mxu0
        %v775 = vadd.f32 0.0, %v774
        %776 = vdwg.mxu0
        %v777 = vrcp.pop %v747
        %v778 = vrcp.pop %v750
        %v779 = vmul.f32 %v773, %v777
        %v780 = vmul.f32 %v775, %v778
        %v781 = vpack.c.bf16 %v780, %v779
        %v782 = vld [vmem:[#allocation13 + $0x4] sm:$0xf]
        %v784 = vsel %vm639, %v781, 0
        %v787 = vsel %vm682, %v782, 0
        %789 = vmatpush.bf16.msra.mxu0 0
        %790 = vmatpush.bf16.msra.mxu0 0
        %791 = vmatpush.bf16.msra.mxu0 0
        %792 = vmatpush.bf16.msra.mxu0 0
        %793 = vmatpush.bf16.msra.mxu0 0
        %794 = vmatpush.bf16.msra.mxu0 0
        %795 = vmatpush.bf16.msra.mxu0 0
        %796 = vmatpush.bf16.msra.mxu0 %v787
        %797 = vmatmul.bf16.gmra.mxu0 %v784
        %v798 = vpop.f32.mrf.mxu0
        %v799 = vadd.f32 0.0, %v798
        %v800 = vpop.f32.mrf.mxu0
        %v801 = vadd.f32 0.0, %v800
        %802 = vdwg.mxu0
        %v804 = vsel %vm639, %v704, 0
        %v807 = vsel %vm682, %v705, 0
        %809 = vmatpush.bf16.msra.mxu0 0
        %810 = vmatpush.bf16.msra.mxu0 0
        %811 = vmatpush.bf16.msra.mxu0 0
        %812 = vmatpush.bf16.msra.mxu0 0
        %813 = vmatpush.bf16.msra.mxu0 0
        %814 = vmatpush.bf16.msra.mxu0 0
        %815 = vmatpush.bf16.msra.mxu0 0
        %816 = vmatpush.bf16.msra.mxu0 %v807
        %817 = vmatmul.bf16.gmra.mxu0 %v804
        %v818 = vpop.f32.mrf.mxu0
        %v819 = vadd.f32 %v799, %v818
        %v820 = vpop.f32.mrf.mxu0
        %v821 = vadd.f32 %v801, %v820
        %822 = vdwg.mxu0
        %823 = vrot.lane.b32.xlu0 %v638, 112
        %v824 = vpop.permute.xlu0 %823
        %825 = vrot.lane.b32.xlu0 %v710, 112
        %v826 = vpop.permute.xlu0 %825
        %v828 = vsel %vm639, %v824, 0
        %v831 = vsel %vm639, %v826, 0
        %833 = vmatpush.bf16.xpose.msra.mxu0 0
        %834 = vmatpush.bf16.xpose.msra.mxu0 0
        %835 = vmatpush.bf16.xpose.msra.mxu0 0
        %836 = vmatpush.bf16.xpose.msra.mxu0 0
        %837 = vmatpush.bf16.xpose.msra.mxu0 0
        %838 = vmatpush.bf16.xpose.msra.mxu0 0
        %839 = vmatpush.bf16.xpose.msra.mxu0 0
        %840 = vmatpush.bf16.xpose.msra.mxu0 %v831
        %841 = vmatmul.bf16.gmra.mxu0 %v828
        %v842 = vpop.f32.mrf.mxu0
        %v843 = vadd.f32 0.0, %v842
        %v844 = vpop.f32.mrf.mxu0
        %v845 = vadd.f32 0.0, %v844
        %846 = vdwg.mxu0
        %v847 = vsel %vm639, %v843, -inf
        %848 = vmax.xlane.f32.xlu0 %v847
        %v849 = vpop.xlane.xlu0 %848
        %v850 = vsel %vm639, %v845, -inf
        %851 = vmax.xlane.f32.xlu0 %v850
        %v852 = vpop.xlane.xlu0 %851
        %v853 = vsub.f32 %v843, %v849
        %v854 = vsub.f32 %v845, %v852
        %v855 = vmul.f32 %v853, 1.442695
        %v856 = vpow.pop %v855
        %v857 = vmul.f32 %v854, 1.442695
        %v858 = vpow.pop %v857
        %v859 = vsel %vm639, %v856, 0.0
        %860 = vadd.xlane.f32.xlu0 %v859
        %v861 = vpop.xlane.xlu0 %860
        %v862 = vsel %vm639, %v858, 0.0
        %863 = vadd.xlane.f32.xlu0 %v862
        %v864 = vpop.xlane.xlu0 %863
        %v865 = vpack.c.bf16 %v858, %v856
        %866 = vrot.lane.b32.xlu0 %v754, 112
        %v867 = vpop.permute.xlu0 %866
        %v869 = vsel %vm639, %v865, 0
        %v872 = vsel %vm682, %v867, 0
        %874 = vmatpush.bf16.msra.mxu0 0
        %875 = vmatpush.bf16.msra.mxu0 0
        %876 = vmatpush.bf16.msra.mxu0 0
        %877 = vmatpush.bf16.msra.mxu0 0
        %878 = vmatpush.bf16.msra.mxu0 0
        %879 = vmatpush.bf16.msra.mxu0 0
        %880 = vmatpush.bf16.msra.mxu0 0
        %881 = vmatpush.bf16.msra.mxu0 %v872
        %882 = vmatmul.bf16.gmra.mxu0 %v869
        %v883 = vpop.f32.mrf.mxu0
        %v884 = vadd.f32 0.0, %v883
        %v885 = vpop.f32.mrf.mxu0
        %v886 = vadd.f32 0.0, %v885
        %887 = vdwg.mxu0
        %v888 = vrcp.pop %v861
        %v889 = vrcp.pop %v864
        %v890 = vmul.f32 %v884, %v888
        %v891 = vmul.f32 %v886, %v889
        %v892 = vpack.c.bf16 %v891, %v890
        %v893 = vld [vmem:[#allocation13 + $0x8] sm:$0xf]
        %v895 = vsel %vm639, %v892, 0
        %v898 = vsel %vm682, %v893, 0
        %900 = vmatpush.bf16.msra.mxu0 0
        %901 = vmatpush.bf16.msra.mxu0 0
        %902 = vmatpush.bf16.msra.mxu0 0
        %903 = vmatpush.bf16.msra.mxu0 0
        %904 = vmatpush.bf16.msra.mxu0 0
        %905 = vmatpush.bf16.msra.mxu0 0
        %906 = vmatpush.bf16.msra.mxu0 0
        %907 = vmatpush.bf16.msra.mxu0 %v898
        %908 = vmatmul.bf16.gmra.mxu0 %v895
        %v909 = vpop.f32.mrf.mxu0
        %v910 = vadd.f32 0.0, %v909
        %v911 = vpop.f32.mrf.mxu0
        %v912 = vadd.f32 0.0, %v911
        %913 = vdwg.mxu0
        %v914 = vadd.f32 %v819, %v910
        %v915 = vadd.f32 %v821, %v912
        %916 = vrot.lane.b32.xlu0 %v638, 104
        %v917 = vpop.permute.xlu0 %916
        %918 = vrot.lane.b32.xlu0 %v710, 104
        %v919 = vpop.permute.xlu0 %918
        %v921 = vsel %vm639, %v917, 0
        %v924 = vsel %vm639, %v919, 0
        %926 = vmatpush.bf16.xpose.msra.mxu0 0
        %927 = vmatpush.bf16.xpose.msra.mxu0 0
        %928 = vmatpush.bf16.xpose.msra.mxu0 0
        %929 = vmatpush.bf16.xpose.msra.mxu0 0
        %930 = vmatpush.bf16.xpose.msra.mxu0 0
        %931 = vmatpush.bf16.xpose.msra.mxu0 0
        %932 = vmatpush.bf16.xpose.msra.mxu0 0
        %933 = vmatpush.bf16.xpose.msra.mxu0 %v924
        %934 = vmatmul.bf16.gmra.mxu0 %v921
        %v935 = vpop.f32.mrf.mxu0
        %v936 = vadd.f32 0.0, %v935
        %v937 = vpop.f32.mrf.mxu0
        %v938 = vadd.f32 0.0, %v937
        %939 = vdwg.mxu0
        %v940 = vsel %vm639, %v936, -inf
        %941 = vmax.xlane.f32.xlu0 %v940
        %v942 = vpop.xlane.xlu0 %941
        %v943 = vsel %vm639, %v938, -inf
        %944 = vmax.xlane.f32.xlu0 %v943
        %v945 = vpop.xlane.xlu0 %944
        %v946 = vsub.f32 %v936, %v942
        %v947 = vsub.f32 %v938, %v945
        %v948 = vmul.f32 %v946, 1.442695
        %v949 = vpow.pop %v948
        %v950 = vmul.f32 %v947, 1.442695
        %v951 = vpow.pop %v950
        %v952 = vsel %vm639, %v949, 0.0
        %953 = vadd.xlane.f32.xlu0 %v952
        %v954 = vpop.xlane.xlu0 %953
        %v955 = vsel %vm639, %v951, 0.0
        %956 = vadd.xlane.f32.xlu0 %v955
        %v957 = vpop.xlane.xlu0 %956
        %v958 = vpack.c.bf16 %v951, %v949
        %959 = vrot.lane.b32.xlu0 %v754, 104
        %v960 = vpop.permute.xlu0 %959
        %v962 = vsel %vm639, %v958, 0
        %v965 = vsel %vm682, %v960, 0
        %967 = vmatpush.bf16.msra.mxu0 0
        %968 = vmatpush.bf16.msra.mxu0 0
        %969 = vmatpush.bf16.msra.mxu0 0
        %970 = vmatpush.bf16.msra.mxu0 0
        %971 = vmatpush.bf16.msra.mxu0 0
        %972 = vmatpush.bf16.msra.mxu0 0
        %973 = vmatpush.bf16.msra.mxu0 0
        %974 = vmatpush.bf16.msra.mxu0 %v965
        %975 = vmatmul.bf16.gmra.mxu0 %v962
        %v976 = vpop.f32.mrf.mxu0
        %v977 = vadd.f32 0.0, %v976
        %v978 = vpop.f32.mrf.mxu0
        %v979 = vadd.f32 0.0, %v978
        %980 = vdwg.mxu0
        %v981 = vrcp.pop %v954
        %v982 = vrcp.pop %v957
        %v983 = vmul.f32 %v977, %v981
        %v984 = vmul.f32 %v979, %v982
        %v985 = vpack.c.bf16 %v984, %v983
        %v986 = vld [vmem:[#allocation13 + $0xc] sm:$0xf]
        %v988 = vsel %vm639, %v985, 0
        %v991 = vsel %vm682, %v986, 0
        %993 = vmatpush.bf16.msra.mxu0 0
        %994 = vmatpush.bf16.msra.mxu0 0
        %995 = vmatpush.bf16.msra.mxu0 0
        %996 = vmatpush.bf16.msra.mxu0 0
        %997 = vmatpush.bf16.msra.mxu0 0
        %998 = vmatpush.bf16.msra.mxu0 0
        %999 = vmatpush.bf16.msra.mxu0 0
        %1000 = vmatpush.bf16.msra.mxu0 %v991
        %1001 = vmatmul.bf16.gmra.mxu0 %v988
        %v1002 = vpop.f32.mrf.mxu0
        %v1003 = vadd.f32 0.0, %v1002
        %v1004 = vpop.f32.mrf.mxu0
        %v1005 = vadd.f32 0.0, %v1004
        %1006 = vdwg.mxu0
        %v1007 = vadd.f32 %v914, %v1003
        %v1008 = vadd.f32 %v915, %v1005
        %v1009 = vld [vmem:[%s9] sm:$0x1]
        %v1011 = vperm.slane %v1009, 0
        %v1013 = vadd.f32 %v1007, %v1011
        %v1014 = vadd.f32 %v1008, %v1011
        %1015 = vst.msk [vmem:[%s502] sm:$0xff] %vm612, %v1013
        %1016 = vst.msk [vmem:[%s502 + $0x8] sm:$0xff] %vm612, %v1014
        %s1017 = sand.u32 %s276, 1
        %s1018 = scalar_lea.sflag [#allocation6], %s1017
        %s1019 = sand.u32 %s276, 1
        %s1020 = smul.addr %s1019, 16
        %s1021 = scalar_lea.vmem [#allocation15], %s1020
        // Predicated region
        $region89: #{tpu_custom_call.1} parent=59 // pred_check
          %p1022 = pneg %p286
        $region90: #{tpu_custom_call.1} parent=59 // pred_check_branch
          %1024 = sbr.rel (%p1022) target = $region92
        $region91: #{tpu_custom_call.1} parent=59 // pred_region
          %s1025 = smul.u32 2, %s37
          %1027 = vsyncadd %s1018, 0
          %s1028 = smul.addr %s36, 2
          %s1029 = sadd.s32 %s1025, %s1028
          %s1030 = smul.addr %s1029, 8
          %s1031 = scalar_lea.hbm %s10, %s1030
          %s1032 = sshll.u32 %s1021, 4
          %s1033 = int_to_ptr.vmem [resolvable:$true] %s1032
          %s1034 = sshll.u32 %s1031, 4
          %s1035 = int_to_ptr.hbm [resolvable:$true] %s1034
          %1040 = dma.vmem_to_hbm [thread:$0]  %s1033, 256, %s1035, %s1018, 128, 128, 8
        $region92: #{tpu_custom_call.1} parent=59 // pred_fallthru
          _
      $region60: #{tpu_custom_call.1} parent=5 // pred_fallthru
        _
      %p1041 = scmp.le.s32.totalorder 2, %s27
      // Predicated region
      $region93: #{tpu_custom_call.1} parent=5 // pred_check
        %p1042 = pneg %p1041
      $region94: #{tpu_custom_call.1} parent=5 // pred_check_branch
        %1044 = sbr.rel (%p1042) target = $region96
      $region95: #{tpu_custom_call.1} parent=5 // pred_region
        %s1045 = ssub.s32 %s27, 2
        // Predicated region
        $region97: #{tpu_custom_call.1} parent=95 // pred_check
          %p1046 = pneg %p292
        $region98: #{tpu_custom_call.1} parent=95 // pred_check_branch
          %1048 = sbr.rel (%p1046) target = $region100
        $region99: #{tpu_custom_call.1} parent=95 // pred_region
          %s1049 = sand.u32 %s277, 1
          %s1050 = scalar_lea.sflag [#allocation6], %s1049
          %s1051 = sand.u32 %s277, 1
          %s1052 = smul.addr %s1051, 16
          %s1053 = scalar_lea.vmem [#allocation15], %s1052
          %1055 = dma.done %s1050, 256
        $region100: #{tpu_custom_call.1} parent=95 // pred_fallthru
          _
      $region96: #{tpu_custom_call.1} parent=5 // pred_fallthru
        _
    $region6: #{tpu_custom_call.1} parent=1 // loop_footer
      %s31 = sadd.s32 1, %s27
    $region7: #{tpu_custom_call.1} parent=1 // loop_footer_branch
      %26 = sbr.rel target = $region3
    $region8: #{tpu_custom_call.1} parent=1 // loop_exit
      _
    %1056 = vsyncpa [#allocation5], 1
    %s1057 = scalar_lea.sflag [#allocation5], 1
    %1058 = vsyncpa %s1057, 1
    %1059 = vsyncpa [#allocation8], 1
    %s1060 = scalar_lea.sflag [#allocation8], 1
    %1061 = vsyncpa %s1060, 1
    %1062 = vsyncpa [#allocation11], 1
    %1063 = vsyncpa [#allocation14], 1
    %1064 = vsyncpa [#allocation6], 1
    %s1065 = scalar_lea.sflag [#allocation6], 1
    %1066 = vsyncpa %s1065, 1

// kernel: tpu_custom_call.1
$region0: #{tpu_custom_call.1}
  #allocation0 [shape = 'u32[]', space=smem, size = 0x4, offset = 0x4, fixed_abs, tag = 'smem constant byte address 0x4 - core index']
  #allocation1 [shape = 'u32[72,128]{1,0:T(1,128)}', space=vmem, size = 0x9000, scoped, tag = 'internal scratch']
  #allocation2 [shape = 'bf16[8,32]{1,0:T(8,128)(2,1)}', space=vmem, size = 0x800, scoped, tag = 'scratch operand']
  #allocation3 [shape = 'bf16[8,32]{1,0:T(8,128)(2,1)}', space=vmem, size = 0x800, scoped, tag = 'scratch operand']
  %s0 = inlined_call_operand.hbm [shape: bf16[2,16,32], index: 0, kind: input, shape index: {}]
  %s1 = inlined_call_operand.hbm [shape: bf16[2,8,24], index: 1, kind: input, shape index: {}]
  %s2 = inlined_call_operand.hbm [shape: bf16[32,32], index: 2, kind: input, shape index: {}]
  %s3 = inlined_call_operand.vmem [shape: f32[1,32], index: 3, kind: input, shape index: {}]
  %s4 = inlined_call_operand.hbm [shape: bf16[24,32], index: 4, kind: input, shape index: {}]
  %s5 = inlined_call_operand.vmem [shape: f32[1,32], index: 5, kind: input, shape index: {}]
  %s6 = inlined_call_operand.hbm [shape: bf16[24,32], index: 6, kind: input, shape index: {}]
  %s7 = inlined_call_operand.vmem [shape: f32[1,32], index: 7, kind: input, shape index: {}]
  %s8 = inlined_call_operand.hbm [shape: bf16[32,32], index: 8, kind: input, shape index: {}]
  %s9 = inlined_call_operand.vmem [shape: f32[1,32], index: 9, kind: input, shape index: {}]
  %s10 = inlined_call_operand.hbm [shape: f32[2,16,32], index: 10, kind: output, shape index: {}]
  %s11 = sld [smem:[#allocation0]]
  $region101: #{tpu_custom_call.1} parent=0
    _
  %s13 = ssub.s32 1, %s11
  %s14 = scalar_select 0, %s13, %s11
  $region1: #{tpu_custom_call.1} parent=0
    #allocation4 [shape = 'u8[8192]{0}', space=vmem, size = 0x2000, scoped, tag = 'input window, operand 0']
    #allocation5 [shape = 's32[2]{0}', space=sflag, size = 0x8, scoped, tag = 'scoped memory for tpu_custom_call.1']
    #allocation6 [shape = 's32[2]{0}', space=sflag, size = 0x8, scoped, tag = 'scoped memory for tpu_custom_call.1']
    #allocation7 [shape = 'u8[4096]{0}', space=vmem, size = 0x1000, scoped, tag = 'input window, operand 1']
    #allocation8 [shape = 's32[2]{0}', space=sflag, size = 0x8, scoped, tag = 'scoped memory for tpu_custom_call.1']
    #allocation9 [shape = 'u8[8192]{0}', space=vmem, size = 0x2000, scoped, tag = 'input window, operand 2, single buffered']
    #allocation10 [shape = 'u8[6144]{0}', space=vmem, size = 0x1800, scoped, tag = 'input window, operand 4, single buffered']
    #allocation11 [shape = 's32[1]{0}', space=sflag, size = 0x4, scoped, tag = 'scoped memory for tpu_custom_call.1']
    #allocation12 [shape = 'u8[6144]{0}', space=vmem, size = 0x1800, scoped, tag = 'input window, operand 6, single buffered']
    #allocation13 [shape = 'u8[8192]{0}', space=vmem, size = 0x2000, scoped, tag = 'input window, operand 8, single buffered']
    #allocation14 [shape = 's32[1]{0}', space=sflag, size = 0x4, scoped, tag = 'scoped memory for tpu_custom_call.1']
    #allocation15 [shape = 'u8[16384]{0}', space=vmem, size = 0x4000, scoped, tag = 'output window, operand 0']
    %15 = vsyncpa [#allocation5], 0
    %s16 = scalar_lea.sflag [#allocation5], 1
    %17 = vsyncpa %s16, 0
    %18 = vsyncpa [#allocation8], 0
    %s19 = scalar_lea.sflag [#allocation8], 1
    %20 = vsyncpa %s19, 0
    %21 = vsyncpa [#allocation11], 0
    %22 = vsyncpa [#allocation14], 0
    %23 = vsyncpa [#allocation6], 0
    %s24 = scalar_lea.sflag [#allocation6], 1
    %25 = vsyncpa %s24, 0
    loop: start=0, step=1, limit=4
    $region2: #{tpu_custom_call.1} parent=1 // loop_pre_header
      _
    $region3: #{tpu_custom_call.1} parent=1 // loop_header
      %s27 = sphi 0, %s31
      %p28 = scmp.ge.s32.totalorder %s27, 4
      %s34 = sphi 0, %s46
      %s35 = sphi 0, %s42
      %s36 = sphi 0, %s34
      %s37 = sphi 0, %s35
      %s38 = sphi 0, %s36
      %s39 = sphi 0, %s37
      %s51 = sphi 0, %s53
      %s54 = sphi 0, %s51
      %s55 = sphi 0, %s54
      %s71 = sphi 0, %s55
      %s77 = sphi 0, %s79
      %s80 = sphi 0, %s77
      %s81 = sphi 0, %s80
      %s97 = sphi 0, %s81
      %s101 = sphi 0, %s101
      %s103 = sphi 0, %s101
      %s104 = sphi 0, %s103
      %s118 = sphi 0, %s104
      %s122 = sphi 0, %s122
      %s124 = sphi 0, %s122
      %s125 = sphi 0, %s124
      %s139 = sphi 0, %s125
      %s143 = sphi 0, %s143
      %s145 = sphi 0, %s143
      %s146 = sphi 0, %s145
      %s160 = sphi 0, %s146
      %s164 = sphi 0, %s164
      %s166 = sphi 0, %s164
      %s167 = sphi 0, %s166
      %s181 = sphi 0, %s167
      %s185 = sphi 0, %s185
      %s187 = sphi 0, %s185
      %s188 = sphi 0, %s187
      %s202 = sphi 0, %s188
      %s206 = sphi 0, %s206
      %s208 = sphi 0, %s206
      %s209 = sphi 0, %s208
      %s223 = sphi 0, %s209
      %s227 = sphi 0, %s227
      %s229 = sphi 0, %s227
      %s230 = sphi 0, %s229
      %s244 = sphi 0, %s230
      %s248 = sphi 0, %s248
      %s250 = sphi 0, %s248
      %s251 = sphi 0, %s250
      %s265 = sphi 0, %s251
      %s273 = sphi 0, %s275
      %s276 = sphi 0, %s273
      %s277 = sphi 0, %s276
      %s293 = sphi 0, %s277
    $region4: #{tpu_custom_call.1} parent=1 // loop_header_branch
      %30 = sbr.rel (%p28) target = $region8
    $region5: #{tpu_custom_call.1} parent=1 // loop_body
      %s32 = ssub.s32 %s27, 1
      %s33 = ssub.s32 %s27, 2
      %s40 = sadd.s32 1, %s35
      %p41 = scmp.ge.s32.totalorder %s40, 1
      %s42 = scalar_select %p41, 0, %s40
      %s43 = sadd.s32 1, %s34
      %s44 = scalar_select %p41, %s43, %s34
      %p45 = scmp.ge.s32.totalorder %s44, 2
      %s46 = scalar_select %p45, 0, %s44
      %s47 = ssub.s32 %s34, %s46
      %s48 = ssub.s32 %s35, %s42
      %s49 = sor.u32 %s47, %s48
      %p50 = scmp.eq.s32.totalorder %s49, 0
      %s52 = sadd.s32 %s51, 1
      %s53 = scalar_select %p50, %s51, %s52
      %p56 = pneg %p50
      %p57 = scmp.eq.s32.totalorder %s27, 1
      %p58 = por %p56, %p57
      %p59 = scmp.ne.s32.totalorder %s51, %s54
      %p60 = scmp.eq.s32.totalorder %s27, 0
      %p61 = por %p59, %p60
      %p62 = scmp.ne.s32.totalorder %s51, %s54
      %p63 = scmp.eq.s32.totalorder %s32, 1
      %p64 = por %p62, %p63
      %p65 = scmp.ne.s32.totalorder %s54, %s55
      %p66 = scmp.eq.s32.totalorder %s32, 0
      %p67 = por %p65, %p66
      %p68 = scmp.ne.s32.totalorder %s54, %s55
      %p69 = scmp.eq.s32.totalorder %s33, 1
      %p70 = por %p68, %p69
      %p72 = scmp.ne.s32.totalorder %s55, %s71
      %p73 = scmp.eq.s32.totalorder %s33, 0
      %p74 = por %p72, %p73
      %s75 = ssub.s32 %s34, %s46
      %p76 = scmp.eq.s32.totalorder %s75, 0
      %s78 = sadd.s32 %s77, 1
      %s79 = scalar_select %p76, %s77, %s78
      %p82 = pneg %p76
      %p83 = scmp.eq.s32.totalorder %s27, 1
      %p84 = por %p82, %p83
      %p85 = scmp.ne.s32.totalorder %s77, %s80
      %p86 = scmp.eq.s32.totalorder %s27, 0
      %p87 = por %p85, %p86
      %p88 = scmp.ne.s32.totalorder %s77, %s80
      %p89 = scmp.eq.s32.totalorder %s32, 1
      %p90 = por %p88, %p89
      %p91 = scmp.ne.s32.totalorder %s80, %s81
      %p92 = scmp.eq.s32.totalorder %s32, 0
      %p93 = por %p91, %p92
      %p94 = scmp.ne.s32.totalorder %s80, %s81
      %p95 = scmp.eq.s32.totalorder %s33, 1
      %p96 = por %p94, %p95
      %p98 = scmp.ne.s32.totalorder %s81, %s97
      %p99 = scmp.eq.s32.totalorder %s33, 0
      %p100 = por %p98, %p99
      %s102 = sadd.s32 %s101, 1
      %p105 = scmp.eq.s32.totalorder %s27, 1
      %p106 = scmp.ne.s32.totalorder %s101, %s103
      %p107 = scmp.eq.s32.totalorder %s27, 0
      %p108 = por %p106, %p107
      %p109 = scmp.ne.s32.totalorder %s101, %s103
      %p110 = scmp.eq.s32.totalorder %s32, 1
      %p111 = por %p109, %p110
      %p112 = scmp.ne.s32.totalorder %s103, %s104
      %p113 = scmp.eq.s32.totalorder %s32, 0
      %p114 = por %p112, %p113
      %p115 = scmp.ne.s32.totalorder %s103, %s104
      %p116 = scmp.eq.s32.totalorder %s33, 1
      %p117 = por %p115, %p116
      %p119 = scmp.ne.s32.totalorder %s104, %s118
      %p120 = scmp.eq.s32.totalorder %s33, 0
      %p121 = por %p119, %p120
      %s123 = sadd.s32 %s122, 1
      %p126 = scmp.eq.s32.totalorder %s27, 1
      %p127 = scmp.ne.s32.totalorder %s122, %s124
      %p128 = scmp.eq.s32.totalorder %s27, 0
      %p129 = por %p127, %p128
      %p130 = scmp.ne.s32.totalorder %s122, %s124
      %p131 = scmp.eq.s32.totalorder %s32, 1
      %p132 = por %p130, %p131
      %p133 = scmp.ne.s32.totalorder %s124, %s125
      %p134 = scmp.eq.s32.totalorder %s32, 0
      %p135 = por %p133, %p134
      %p136 = scmp.ne.s32.totalorder %s124, %s125
      %p137 = scmp.eq.s32.totalorder %s33, 1
      %p138 = por %p136, %p137
      %p140 = scmp.ne.s32.totalorder %s125, %s139
      %p141 = scmp.eq.s32.totalorder %s33, 0
      %p142 = por %p140, %p141
      %s144 = sadd.s32 %s143, 1
      %p147 = scmp.eq.s32.totalorder %s27, 1
      %p148 = scmp.ne.s32.totalorder %s143, %s145
      %p149 = scmp.eq.s32.totalorder %s27, 0
      %p150 = por %p148, %p149
      %p151 = scmp.ne.s32.totalorder %s143, %s145
      %p152 = scmp.eq.s32.totalorder %s32, 1
      %p153 = por %p151, %p152
      %p154 = scmp.ne.s32.totalorder %s145, %s146
      %p155 = scmp.eq.s32.totalorder %s32, 0
      %p156 = por %p154, %p155
      %p157 = scmp.ne.s32.totalorder %s145, %s146
      %p158 = scmp.eq.s32.totalorder %s33, 1
      %p159 = por %p157, %p158
      %p161 = scmp.ne.s32.totalorder %s146, %s160
      %p162 = scmp.eq.s32.totalorder %s33, 0
      %p163 = por %p161, %p162
      %s165 = sadd.s32 %s164, 1
      %p168 = scmp.eq.s32.totalorder %s27, 1
      %p169 = scmp.ne.s32.totalorder %s164, %s166
      %p170 = scmp.eq.s32.totalorder %s27, 0
      %p171 = por %p169, %p170
      %p172 = scmp.ne.s32.totalorder %s164, %s166
      %p173 = scmp.eq.s32.totalorder %s32, 1
      %p174 = por %p172, %p173
      %p175 = scmp.ne.s32.totalorder %s166, %s167
      %p176 = scmp.eq.s32.totalorder %s32, 0
      %p177 = por %p175, %p176
      %p178 = scmp.ne.s32.totalorder %s166, %s167
      %p179 = scmp.eq.s32.totalorder %s33, 1
      %p180 = por %p178, %p179
      %p182 = scmp.ne.s32.totalorder %s167, %s181
      %p183 = scmp.eq.s32.totalorder %s33, 0
      %p184 = por %p182, %p183
      %s186 = sadd.s32 %s185, 1
      %p189 = scmp.eq.s32.totalorder %s27, 1
      %p190 = scmp.ne.s32.totalorder %s185, %s187
      %p191 = scmp.eq.s32.totalorder %s27, 0
      %p192 = por %p190, %p191
      %p193 = scmp.ne.s32.totalorder %s185, %s187
      %p194 = scmp.eq.s32.totalorder %s32, 1
      %p195 = por %p193, %p194
      %p196 = scmp.ne.s32.totalorder %s187, %s188
      %p197 = scmp.eq.s32.totalorder %s32, 0
      %p198 = por %p196, %p197
      %p199 = scmp.ne.s32.totalorder %s187, %s188
      %p200 = scmp.eq.s32.totalorder %s33, 1
      %p201 = por %p199, %p200
      %p203 = scmp.ne.s32.totalorder %s188, %s202
      %p204 = scmp.eq.s32.totalorder %s33, 0
      %p205 = por %p203, %p204
      %s207 = sadd.s32 %s206, 1
      %p210 = scmp.eq.s32.totalorder %s27, 1
      %p211 = scmp.ne.s32.totalorder %s206, %s208
      %p212 = scmp.eq.s32.totalorder %s27, 0
      %p213 = por %p211, %p212
      %p214 = scmp.ne.s32.totalorder %s206, %s208
      %p215 = scmp.eq.s32.totalorder %s32, 1
      %p216 = por %p214, %p215
      %p217 = scmp.ne.s32.totalorder %s208, %s209
      %p218 = scmp.eq.s32.totalorder %s32, 0
      %p219 = por %p217, %p218
      %p220 = scmp.ne.s32.totalorder %s208, %s209
      %p221 = scmp.eq.s32.totalorder %s33, 1
      %p222 = por %p220, %p221
      %p224 = scmp.ne.s32.totalorder %s209, %s223
      %p225 = scmp.eq.s32.totalorder %s33, 0
      %p226 = por %p224, %p225
      %s228 = sadd.s32 %s227, 1
      %p231 = scmp.eq.s32.totalorder %s27, 1
      %p232 = scmp.ne.s32.totalorder %s227, %s229
      %p233 = scmp.eq.s32.totalorder %s27, 0
      %p234 = por %p232, %p233
      %p235 = scmp.ne.s32.totalorder %s227, %s229
      %p236 = scmp.eq.s32.totalorder %s32, 1
      %p237 = por %p235, %p236
      %p238 = scmp.ne.s32.totalorder %s229, %s230
      %p239 = scmp.eq.s32.totalorder %s32, 0
      %p240 = por %p238, %p239
      %p241 = scmp.ne.s32.totalorder %s229, %s230
      %p242 = scmp.eq.s32.totalorder %s33, 1
      %p243 = por %p241, %p242
      %p245 = scmp.ne.s32.totalorder %s230, %s244
      %p246 = scmp.eq.s32.totalorder %s33, 0
      %p247 = por %p245, %p246
      %s249 = sadd.s32 %s248, 1
      %p252 = scmp.eq.s32.totalorder %s27, 1
      %p253 = scmp.ne.s32.totalorder %s248, %s250
      %p254 = scmp.eq.s32.totalorder %s27, 0
      %p255 = por %p253, %p254
      %p256 = scmp.ne.s32.totalorder %s248, %s250
      %p257 = scmp.eq.s32.totalorder %s32, 1
      %p258 = por %p256, %p257
      %p259 = scmp.ne.s32.totalorder %s250, %s251
      %p260 = scmp.eq.s32.totalorder %s32, 0
      %p261 = por %p259, %p260
      %p262 = scmp.ne.s32.totalorder %s250, %s251
      %p263 = scmp.eq.s32.totalorder %s33, 1
      %p264 = por %p262, %p263
      %p266 = scmp.ne.s32.totalorder %s251, %s265
      %p267 = scmp.eq.s32.totalorder %s33, 0
      %p268 = por %p266, %p267
      %s269 = ssub.s32 %s34, %s46
      %s270 = ssub.s32 %s35, %s42
      %s271 = sor.u32 %s269, %s270
      %p272 = scmp.eq.s32.totalorder %s271, 0
      %s274 = sadd.s32 %s273, 1
      %s275 = scalar_select %p272, %s273, %s274
      %p278 = pneg %p272
      %p279 = scmp.eq.s32.totalorder %s27, 1
      %p280 = por %p278, %p279
      %p281 = scmp.ne.s32.totalorder %s273, %s276
      %p282 = scmp.eq.s32.totalorder %s27, 0
      %p283 = por %p281, %p282
      %p284 = scmp.ne.s32.totalorder %s273, %s276
      %p285 = scmp.eq.s32.totalorder %s32, 1
      %p286 = por %p284, %p285
      %p287 = scmp.ne.s32.totalorder %s276, %s277
      %p288 = scmp.eq.s32.totalorder %s32, 0
      %p289 = por %p287, %p288
      %p290 = scmp.ne.s32.totalorder %s276, %s277
      %p291 = scmp.eq.s32.totalorder %s33, 1
      %p292 = por %p290, %p291
      %p294 = scmp.ne.s32.totalorder %s277, %s293
      %p295 = scmp.eq.s32.totalorder %s33, 0
      %p296 = por %p294, %p295
      %p297 = scmp.le.s32.totalorder 1, %s27
      %p298 = scmp.lt.s32.totalorder %s27, 3
      %p299 = pnand %p297, %p298
      %p300 = pneg %p299
      // Predicated region
      $region9: #{tpu_custom_call.1} parent=5 // pred_check
        _
      $region10: #{tpu_custom_call.1} parent=5 // pred_check_branch
        %302 = sbr.rel (%p299) target = $region12
      $region11: #{tpu_custom_call.1} parent=5 // pred_region
        %s303 = ssub.s32 %s27, 1
        // Predicated region
        $region13: #{tpu_custom_call.1} parent=11 // pred_check
          %p304 = pneg %p114
        $region14: #{tpu_custom_call.1} parent=11 // pred_check_branch
          %306 = sbr.rel (%p304) target = $region16
        $region15: #{tpu_custom_call.1} parent=11 // pred_region
          %308 = vsyncadd [#allocation8], 0
          %s309 = sshll.u32 %s2, 4
          %s310 = int_to_ptr.hbm [resolvable:$true] %s309
          %s311 = sshll.u32 [#allocation9], 4
          %s312 = int_to_ptr.vmem [resolvable:$true] %s311
          %317 = dma.hbm_to_vmem [thread:$0]  %s310, 256, %s312, [#allocation8], 64, 64, 4
        $region16: #{tpu_custom_call.1} parent=11 // pred_fallthru
          _
        // Predicated region
        $region17: #{tpu_custom_call.1} parent=11 // pred_check
          %p318 = pneg %p135
        $region18: #{tpu_custom_call.1} parent=11 // pred_check_branch
          %320 = sbr.rel (%p318) target = $region20
        $region19: #{tpu_custom_call.1} parent=11 // pred_region
          _
        $region20: #{tpu_custom_call.1} parent=11 // pred_fallthru
          _
        // Predicated region
        $region21: #{tpu_custom_call.1} parent=11 // pred_check
          %p321 = pneg %p156
        $region22: #{tpu_custom_call.1} parent=11 // pred_check_branch
          %323 = sbr.rel (%p321) target = $region24
        $region23: #{tpu_custom_call.1} parent=11 // pred_region
          %325 = vsyncadd [#allocation11], 0
          %s326 = sshll.u32 %s4, 4
          %s327 = int_to_ptr.hbm [resolvable:$true] %s326
          %s328 = sshll.u32 [#allocation10], 4
          %s329 = int_to_ptr.vmem [resolvable:$true] %s328
          %334 = dma.hbm_to_vmem [thread:$0]  %s327, 192, %s329, [#allocation11], 64, 64, 4
        $region24: #{tpu_custom_call.1} parent=11 // pred_fallthru
          _
        // Predicated region
        $region25: #{tpu_custom_call.1} parent=11 // pred_check
          %p335 = pneg %p177
        $region26: #{tpu_custom_call.1} parent=11 // pred_check_branch
          %337 = sbr.rel (%p335) target = $region28
        $region27: #{tpu_custom_call.1} parent=11 // pred_region
          _
        $region28: #{tpu_custom_call.1} parent=11 // pred_fallthru
          _
        // Predicated region
        $region29: #{tpu_custom_call.1} parent=11 // pred_check
          %p338 = pneg %p198
        $region30: #{tpu_custom_call.1} parent=11 // pred_check_branch
          %340 = sbr.rel (%p338) target = $region32
        $region31: #{tpu_custom_call.1} parent=11 // pred_region
          %342 = vsyncadd [#allocation11], 0
          %s343 = sshll.u32 %s6, 4
          %s344 = int_to_ptr.hbm [resolvable:$true] %s343
          %s345 = sshll.u32 [#allocation12], 4
          %s346 = int_to_ptr.vmem [resolvable:$true] %s345
          %351 = dma.hbm_to_vmem [thread:$0]  %s344, 192, %s346, [#allocation11], 64, 64, 4
        $region32: #{tpu_custom_call.1} parent=11 // pred_fallthru
          _
        // Predicated region
        $region33: #{tpu_custom_call.1} parent=11 // pred_check
          %p352 = pneg %p219
        $region34: #{tpu_custom_call.1} parent=11 // pred_check_branch
          %354 = sbr.rel (%p352) target = $region36
        $region35: #{tpu_custom_call.1} parent=11 // pred_region
          _
        $region36: #{tpu_custom_call.1} parent=11 // pred_fallthru
          _
        // Predicated region
        $region37: #{tpu_custom_call.1} parent=11 // pred_check
          %p355 = pneg %p240
        $region38: #{tpu_custom_call.1} parent=11 // pred_check_branch
          %357 = sbr.rel (%p355) target = $region40
        $region39: #{tpu_custom_call.1} parent=11 // pred_region
          %359 = vsyncadd [#allocation14], 0
          %s360 = sshll.u32 %s8, 4
          %s361 = int_to_ptr.hbm [resolvable:$true] %s360
          %s362 = sshll.u32 [#allocation13], 4
          %s363 = int_to_ptr.vmem [resolvable:$true] %s362
          %368 = dma.hbm_to_vmem [thread:$0]  %s361, 256, %s363, [#allocation14], 64, 64, 4
        $region40: #{tpu_custom_call.1} parent=11 // pred_fallthru
          _
        // Predicated region
        $region41: #{tpu_custom_call.1} parent=11 // pred_check
          %p369 = pneg %p261
        $region42: #{tpu_custom_call.1} parent=11 // pred_check_branch
          %371 = sbr.rel (%p369) target = $region44
        $region43: #{tpu_custom_call.1} parent=11 // pred_region
          _
        $region44: #{tpu_custom_call.1} parent=11 // pred_fallthru
          _
      $region12: #{tpu_custom_call.1} parent=5 // pred_fallthru
        _
      %p372 = scmp.lt.s32.totalorder %s27, 2
      // Predicated region
      $region45: #{tpu_custom_call.1} parent=5 // pred_check
        %p373 = pneg %p372
      $region46: #{tpu_custom_call.1} parent=5 // pred_check_branch
        %375 = sbr.rel (%p373) target = $region48
      $region47: #{tpu_custom_call.1} parent=5 // pred_region
        // Predicated region
        $region49: #{tpu_custom_call.1} parent=47 // pred_check
          %p376 = pneg %p61
        $region50: #{tpu_custom_call.1} parent=47 // pred_check_branch
          %378 = sbr.rel (%p376) target = $region52
        $region51: #{tpu_custom_call.1} parent=47 // pred_region
          %s379 = sand.u32 %s51, 1
          %s380 = scalar_lea.sflag [#allocation5], %s379
          %s381 = sand.u32 %s51, 1
          %s382 = smul.addr %s381, 8
          %s383 = scalar_lea.vmem [#allocation4], %s382
          %s384 = smul.u32 2, %s35
          %386 = vsyncadd %s380, 0
          %s387 = smul.addr %s34, 2
          %s388 = sadd.s32 %s384, %s387
          %s389 = smul.addr %s388, 4
          %s390 = scalar_lea.hbm %s0, %s389
          %s391 = sshll.u32 %s390, 4
          %s392 = int_to_ptr.hbm [resolvable:$true] %s391
          %s393 = sshll.u32 %s383, 4
          %s394 = int_to_ptr.vmem [resolvable:$true] %s393
          %399 = dma.hbm_to_vmem [thread:$0]  %s392, 128, %s394, %s380, 64, 64, 4
        $region52: #{tpu_custom_call.1} parent=47 // pred_fallthru
          _
        // Predicated region
        $region53: #{tpu_custom_call.1} parent=47 // pred_check
          %p400 = pneg %p87
        $region54: #{tpu_custom_call.1} parent=47 // pred_check_branch
          %402 = sbr.rel (%p400) target = $region56
        $region55: #{tpu_custom_call.1} parent=47 // pred_region
          %s403 = sand.u32 %s27, 1
          %s404 = scalar_lea.sflag [#allocation8], %s403
          %s405 = sand.u32 %s77, 1
          %s406 = smul.addr %s405, 4
          %s407 = scalar_lea.vmem [#allocation7], %s406
          %409 = vsyncadd %s404, 0
          %s410 = smul.addr %s34, 4
          %s411 = scalar_lea.hbm %s1, %s410
          %s413 = sshll.u32 %s411, 4
          %s414 = int_to_ptr.hbm [resolvable:$true] %s413
          %s415 = sshll.u32 %s407, 4
          %s416 = int_to_ptr.vmem [resolvable:$true] %s415
          %418 = dma.hbm_to_vmem [thread:$0]  %s414, 64, %s416, %s404
        $region56: #{tpu_custom_call.1} parent=47 // pred_fallthru
          _
      $region48: #{tpu_custom_call.1} parent=5 // pred_fallthru
        _
      %p419 = scmp.le.s32.totalorder 1, %s27
      %p420 = scmp.lt.s32.totalorder %s27, 3
      %p421 = pnand %p419, %p420
      %p422 = pneg %p421
      // Predicated region
      $region57: #{tpu_custom_call.1} parent=5 // pred_check
        _
      $region58: #{tpu_custom_call.1} parent=5 // pred_check_branch
        %424 = sbr.rel (%p421) target = $region60
      $region59: #{tpu_custom_call.1} parent=5 // pred_region
        %s425 = ssub.s32 %s27, 1
        %s426 = sand.u32 %s54, 1
        %s427 = scalar_lea.sflag [#allocation5], %s426
        %s428 = sand.u32 %s54, 1
        %s429 = smul.addr %s428, 8
        %s430 = scalar_lea.vmem [#allocation4], %s429
        // Predicated region
        $region61: #{tpu_custom_call.1} parent=59 // pred_check
          %p431 = pneg %p67
        $region62: #{tpu_custom_call.1} parent=59 // pred_check_branch
          %433 = sbr.rel (%p431) target = $region64
        $region63: #{tpu_custom_call.1} parent=59 // pred_region
          %435 = dma.done %s427, 128
        $region64: #{tpu_custom_call.1} parent=59 // pred_fallthru
          _
        %s436 = sand.u32 %s32, 1
        %s437 = scalar_lea.sflag [#allocation8], %s436
        %s438 = sand.u32 %s80, 1
        %s439 = smul.addr %s438, 4
        %s440 = scalar_lea.vmem [#allocation7], %s439
        // Predicated region
        $region65: #{tpu_custom_call.1} parent=59 // pred_check
          %p441 = pneg %p93
        $region66: #{tpu_custom_call.1} parent=59 // pred_check_branch
          %443 = sbr.rel (%p441) target = $region68
        $region67: #{tpu_custom_call.1} parent=59 // pred_region
          %445 = dma.done %s437, 64
        $region68: #{tpu_custom_call.1} parent=59 // pred_fallthru
          _
        // Predicated region
        $region69: #{tpu_custom_call.1} parent=59 // pred_check
          %p446 = pneg %p114
        $region70: #{tpu_custom_call.1} parent=59 // pred_check_branch
          %448 = sbr.rel (%p446) target = $region72
        $region71: #{tpu_custom_call.1} parent=59 // pred_region
          %450 = dma.done [#allocation8], 256
        $region72: #{tpu_custom_call.1} parent=59 // pred_fallthru
          _
        // Predicated region
        $region73: #{tpu_custom_call.1} parent=59 // pred_check
          %p451 = pneg %p156
        $region74: #{tpu_custom_call.1} parent=59 // pred_check_branch
          %453 = sbr.rel (%p451) target = $region76
        $region75: #{tpu_custom_call.1} parent=59 // pred_region
          %455 = dma.done [#allocation11], 192
        $region76: #{tpu_custom_call.1} parent=59 // pred_fallthru
          _
        // Predicated region
        $region77: #{tpu_custom_call.1} parent=59 // pred_check
          %p456 = pneg %p198
        $region78: #{tpu_custom_call.1} parent=59 // pred_check_branch
          %458 = sbr.rel (%p456) target = $region80
        $region79: #{tpu_custom_call.1} parent=59 // pred_region
          %460 = dma.done [#allocation11], 192
        $region80: #{tpu_custom_call.1} parent=59 // pred_fallthru
          _
        // Predicated region
        $region81: #{tpu_custom_call.1} parent=59 // pred_check
          %p461 = pneg %p240
        $region82: #{tpu_custom_call.1} parent=59 // pred_check_branch
          %463 = sbr.rel (%p461) target = $region84
        $region83: #{tpu_custom_call.1} parent=59 // pred_region
          %465 = dma.done [#allocation14], 256
        $region84: #{tpu_custom_call.1} parent=59 // pred_fallthru
          _
        %s466 = sand.u32 %s54, 1
        %s467 = scalar_lea.sflag [#allocation5], %s466
        %s468 = sand.u32 %s54, 1
        %s469 = smul.addr %s468, 8
        %s470 = scalar_lea.vmem [#allocation4], %s469
        %p471 = pneg %p67
        %p472 = pneg %p64
        %s473 = sand.u32 %s32, 1
        %s474 = scalar_lea.sflag [#allocation8], %s473
        %s475 = sand.u32 %s80, 1
        %s476 = smul.addr %s475, 4
        %s477 = scalar_lea.vmem [#allocation7], %s476
        %p478 = pneg %p93
        %p479 = pneg %p90
        %p480 = pneg %p114
        %p481 = pneg %p111
        %p482 = pneg %p135
        %p483 = pneg %p132
        %p484 = pneg %p156
        %p485 = pneg %p153
        %p486 = pneg %p177
        %p487 = pneg %p174
        %p488 = pneg %p198
        %p489 = pneg %p195
        %p490 = pneg %p219
        %p491 = pneg %p216
        %p492 = pneg %p240
        %p493 = pneg %p237
        %p494 = pneg %p261
        %p495 = pneg %p258
        %p496 = pneg %p289
        %p497 = pneg %p286
        %s498 = sand.u32 %s276, 1
        %s499 = scalar_lea.sflag [#allocation6], %s498
        %s500 = sand.u32 %s276, 1
        %s501 = smul.addr %s500, 16
        %s502 = scalar_lea.vmem [#allocation15], %s501
        %s503 = smul.u32 2, %s37
        %s504 = smul.u32 2, %s37
        %p506 = scmp.eq.s32.totalorder %s37, 0
        // Predicated region
        $region85: #{tpu_custom_call.1} parent=59 // pred_check
          %p507 = pneg %p506
        $region86: #{tpu_custom_call.1} parent=59 // pred_check_branch
          %509 = sbr.rel (%p507) target = $region88
        $region87: #{tpu_custom_call.1} parent=59 // pred_region
          %v510 = vld [vmem:[%s440] sm:$0xf]
          %v511 = vld [vmem:[#allocation10] sm:$0xf]
          %v512 = vld [vmem:[#allocation10 + $0x4] sm:$0xf]
          %v513 = vld [vmem:[#allocation10 + $0x8] sm:$0xf]
          %v514 = vld [vmem:[%s5] sm:$0x1]
          %v516 = vperm.slane %v514, 0
          %v521 = vunpack.c.l.b16 %v511
          %v522 = vunpack.c.l.b16 %v512
          %v523 = vunpack.c.l.b16 %v513
          %v524 = vpack.c.b16 %v522, %v521
          %v525 = vpack.c.b16 %v523, %v523
          %vm527 = vcmask 195584
          %v529 = vsel %vm527, %v510, 0
          %vm531 = vcmask 1043456
          %v533 = vsel %vm531, %v525, 0
          %535 = vmatpush.bf16.msra.mxu0 0
          %536 = vmatpush.bf16.msra.mxu0 0
          %537 = vmatpush.bf16.msra.mxu0 0
          %538 = vmatpush.bf16.msra.mxu0 0
          %539 = vmatpush.bf16.msra.mxu0 0
          %540 = vmatpush.bf16.msra.mxu0 0
          %541 = vmatpush.bf16.msra.mxu0 %v533
          %542 = vmatpush.bf16.msra.mxu0 %v524
          %543 = vmatmul.bf16.gmra.mxu0 %v529
          %v544 = vpop.f32.mrf.mxu0
          %v545 = vadd.f32 %v516, %v544
          %v546 = vpop.f32.mrf.mxu0
          %547 = vdwg.mxu0
          %v548 = vld [vmem:[#allocation12] sm:$0xf]
          %v549 = vld [vmem:[#allocation12 + $0x4] sm:$0xf]
          %v550 = vld [vmem:[#allocation12 + $0x8] sm:$0xf]
          %v551 = vld [vmem:[%s7] sm:$0x1]
          %v553 = vperm.slane %v551, 0
          %v558 = vunpack.c.l.b16 %v548
          %v559 = vunpack.c.l.b16 %v549
          %v560 = vunpack.c.l.b16 %v550
          %v561 = vpack.c.b16 %v559, %v558
          %v562 = vpack.c.b16 %v560, %v560
          %v565 = vsel %vm531, %v562, 0
          %567 = vmatpush.bf16.msra.mxu0 0
          %568 = vmatpush.bf16.msra.mxu0 0
          %569 = vmatpush.bf16.msra.mxu0 0
          %570 = vmatpush.bf16.msra.mxu0 0
          %571 = vmatpush.bf16.msra.mxu0 0
          %572 = vmatpush.bf16.msra.mxu0 0
          %573 = vmatpush.bf16.msra.mxu0 %v565
          %574 = vmatpush.bf16.msra.mxu0 %v561
          %575 = vmatmul.bf16.gmra.mxu0 %v529
          %v576 = vpop.f32.mrf.mxu0
          %v577 = vadd.f32 %v553, %v576
          %v578 = vpop.f32.mrf.mxu0
          %579 = vdwg.mxu0
          %v580 = vpack.c.bf16 %v545, %v545
          %vm581 = vcmask 257024
          %582 = vst.msk [vmem:[#allocation2] sm:$0xf] %vm581, %v580
          %v583 = vpack.c.bf16 %v577, %v577
          %584 = vst.msk [vmem:[#allocation3] sm:$0xf] %vm581, %v583
        $region88: #{tpu_custom_call.1} parent=59 // pred_fallthru
          _
        %v585 = vld [vmem:[%s430] sm:$0xf]
        %v586 = vld [vmem:[%s430 + $0x4] sm:$0xf]
        %v587 = vld [vmem:[#allocation9] sm:$0xf]
        %v588 = vld [vmem:[#allocation9 + $0x4] sm:$0xf]
        %v589 = vld [vmem:[#allocation9 + $0x8] sm:$0xf]
        %v590 = vld [vmem:[#allocation9 + $0xc] sm:$0xf]
        %v591 = vld [vmem:[%s3] sm:$0x1]
        %v593 = vperm.slane %v591, 0
        %v597 = vunpack.c.l.b16 %v585
        %v598 = vunpack.c.l.b16 %v586
        %v599 = vpack.c.b16 %v598, %v597
        %v604 = vunpack.c.l.b16 %v587
        %v605 = vunpack.c.l.b16 %v588
        %v606 = vunpack.c.l.b16 %v589
        %v607 = vunpack.c.l.b16 %v590
        %v608 = vpack.c.b16 %v605, %v604
        %v609 = vpack.c.b16 %v607, %v606
        %vm612 = vcmask 261120
        %v614 = vsel %vm612, %v599, 0
        %616 = vmatpush.bf16.msra.mxu0 0
        %617 = vmatpush.bf16.msra.mxu0 0
        %618 = vmatpush.bf16.msra.mxu0 0
        %619 = vmatpush.bf16.msra.mxu0 0
        %620 = vmatpush.bf16.msra.mxu0 0
        %621 = vmatpush.bf16.msra.mxu0 0
        %622 = vmatpush.bf16.msra.mxu0 %v609
        %623 = vmatpush.bf16.msra.mxu0 %v608
        %624 = vmatmul.bf16.gmra.mxu0 %v614
        %v625 = vpop.f32.mrf.mxu0
        %v626 = vadd.f32 %v593, %v625
        %v627 = vpop.f32.mrf.mxu0
        %v628 = vadd.f32 %v593, %v627
        %629 = vdwg.mxu0
        %v630 = vpack.c.bf16 %v626, %v626
        %v631 = vpack.c.bf16 %v628, %v628
        %v632 = vld [vmem:[#allocation2] sm:$0xf]
        %v633 = vld [vmem:[#allocation3] sm:$0xf]
        %v636 = vunpack.c.l.b16 %v630
        %v637 = vunpack.c.l.b16 %v631
        %v638 = vpack.c.b16 %v637, %v636
        %vm639 = vcmask 64512
        %v641 = vsel %vm639, %v638, 0
        %v644 = vsel %vm639, %v632, 0
        %646 = vmatpush.bf16.xpose.msra.mxu0 0
        %647 = vmatpush.bf16.xpose.msra.mxu0 0
        %648 = vmatpush.bf16.xpose.msra.mxu0 0
        %649 = vmatpush.bf16.xpose.msra.mxu0 0
        %650 = vmatpush.bf16.xpose.msra.mxu0 0
        %651 = vmatpush.bf16.xpose.msra.mxu0 0
        %652 = vmatpush.bf16.xpose.msra.mxu0 0
        %653 = vmatpush.bf16.xpose.msra.mxu0 %v644
        %654 = vmatmul.bf16.gmra.mxu0 %v641
        %v655 = vpop.f32.mrf.mxu0
        %v656 = vadd.f32 0.0, %v655
        %v657 = vpop.f32.mrf.mxu0
        %v658 = vadd.f32 0.0, %v657
        %659 = vdwg.mxu0
        %v660 = vsel %vm639, %v656, -inf
        %661 = vmax.xlane.f32.xlu0 %v660
        %v662 = vpop.xlane.xlu0 %661
        %v663 = vsel %vm639, %v658, -inf
        %664 = vmax.xlane.f32.xlu0 %v663
        %v665 = vpop.xlane.xlu0 %664
        %v666 = vsub.f32 %v656, %v662
        %v667 = vsub.f32 %v658, %v665
        %v668 = vmul.f32 %v666, 1.442695
        %v669 = vpow.pop %v668
        %v670 = vmul.f32 %v667, 1.442695
        %v671 = vpow.pop %v670
        %v672 = vsel %vm639, %v669, 0.0
        %673 = vadd.xlane.f32.xlu0 %v672
        %v674 = vpop.xlane.xlu0 %673
        %v675 = vsel %vm639, %v671, 0.0
        %676 = vadd.xlane.f32.xlu0 %v675
        %v677 = vpop.xlane.xlu0 %676
        %v678 = vpack.c.bf16 %v671, %v669
        %v680 = vsel %vm639, %v678, 0
        %vm682 = vcmask 1043456
        %v684 = vsel %vm682, %v633, 0
        %686 = vmatpush.bf16.msra.mxu0 0
        %687 = vmatpush.bf16.msra.mxu0 0
        %688 = vmatpush.bf16.msra.mxu0 0
        %689 = vmatpush.bf16.msra.mxu0 0
        %690 = vmatpush.bf16.msra.mxu0 0
        %691 = vmatpush.bf16.msra.mxu0 0
        %692 = vmatpush.bf16.msra.mxu0 0
        %693 = vmatpush.bf16.msra.mxu0 %v684
        %694 = vmatmul.bf16.gmra.mxu0 %v680
        %v695 = vpop.f32.mrf.mxu0
        %v696 = vadd.f32 0.0, %v695
        %v697 = vpop.f32.mrf.mxu0
        %v698 = vadd.f32 0.0, %v697
        %699 = vdwg.mxu0
        %v700 = vrcp.pop %v674
        %v701 = vrcp.pop %v677
        %v702 = vmul.f32 %v696, %v700
        %v703 = vmul.f32 %v698, %v701
        %v704 = vpack.c.bf16 %v703, %v702
        %v705 = vld [vmem:[#allocation13] sm:$0xf]
        %706 = vrot.lane.b32.xlu0 %v638, 120
        %v707 = vpop.permute.xlu0 %706
        %v709 = vunpack.c.l.b16 %v632
        %v710 = vpack.c.b16 %v709, %v709
        %711 = vrot.lane.b32.xlu0 %v710, 120
        %v712 = vpop.permute.xlu0 %711
        %v714 = vsel %vm639, %v707, 0
        %v717 = vsel %vm639, %v712, 0
        %719 = vmatpush.bf16.xpose.msra.mxu0 0
        %720 = vmatpush.bf16.xpose.msra.mxu0 0
        %721 = vmatpush.bf16.xpose.msra.mxu0 0
        %722 = vmatpush.bf16.xpose.msra.mxu0 0
        %723 = vmatpush.bf16.xpose.msra.mxu0 0
        %724 = vmatpush.bf16.xpose.msra.mxu0 0
        %725 = vmatpush.bf16.xpose.msra.mxu0 0
        %726 = vmatpush.bf16.xpose.msra.mxu0 %v717
        %727 = vmatmul.bf16.gmra.mxu0 %v714
        %v728 = vpop.f32.mrf.mxu0
        %v729 = vadd.f32 0.0, %v728
        %v730 = vpop.f32.mrf.mxu0
        %v731 = vadd.f32 0.0, %v730
        %732 = vdwg.mxu0
        %v733 = vsel %vm639, %v729, -inf
        %734 = vmax.xlane.f32.xlu0 %v733
        %v735 = vpop.xlane.xlu0 %734
        %v736 = vsel %vm639, %v731, -inf
        %737 = vmax.xlane.f32.xlu0 %v736
        %v738 = vpop.xlane.xlu0 %737
        %v739 = vsub.f32 %v729, %v735
        %v740 = vsub.f32 %v731, %v738
        %v741 = vmul.f32 %v739, 1.442695
        %v742 = vpow.pop %v741
        %v743 = vmul.f32 %v740, 1.442695
        %v744 = vpow.pop %v743
        %v745 = vsel %vm639, %v742, 0.0
        %746 = vadd.xlane.f32.xlu0 %v745
        %v747 = vpop.xlane.xlu0 %746
        %v748 = vsel %vm639, %v744, 0.0
        %749 = vadd.xlane.f32.xlu0 %v748
        %v750 = vpop.xlane.xlu0 %749
        %v751 = vpack.c.bf16 %v744, %v742
        %v753 = vunpack.c.l.b16 %v633
        %v754 = vpack.c.b16 %v753, %v753
        %755 = vrot.lane.b32.xlu0 %v754, 120
        %v756 = vpop.permute.xlu0 %755
        %v758 = vsel %vm639, %v751, 0
        %v761 = vsel %vm682, %v756, 0
        %763 = vmatpush.bf16.msra.mxu0 0
        %764 = vmatpush.bf16.msra.mxu0 0
        %765 = vmatpush.bf16.msra.mxu0 0
        %766 = vmatpush.bf16.msra.mxu0 0
        %767 = vmatpush.bf16.msra.mxu0 0
        %768 = vmatpush.bf16.msra.mxu0 0
        %769 = vmatpush.bf16.msra.mxu0 0
        %770 = vmatpush.bf16.msra.mxu0 %v761
        %771 = vmatmul.bf16.gmra.mxu0 %v758
        %v772 = vpop.f32.mrf.mxu0
        %v773 = vadd.f32 0.0, %v772
        %v774 = vpop.f32.mrf.mxu0
        %v775 = vadd.f32 0.0, %v774
        %776 = vdwg.mxu0
        %v777 = vrcp.pop %v747
        %v778 = vrcp.pop %v750
        %v779 = vmul.f32 %v773, %v777
        %v780 = vmul.f32 %v775, %v778
        %v781 = vpack.c.bf16 %v780, %v779
        %v782 = vld [vmem:[#allocation13 + $0x4] sm:$0xf]
        %v784 = vsel %vm639, %v781, 0
        %v787 = vsel %vm682, %v782, 0
        %789 = vmatpush.bf16.msra.mxu0 0
        %790 = vmatpush.bf16.msra.mxu0 0
        %791 = vmatpush.bf16.msra.mxu0 0
        %792 = vmatpush.bf16.msra.mxu0 0
        %793 = vmatpush.bf16.msra.mxu0 0
        %794 = vmatpush.bf16.msra.mxu0 0
        %795 = vmatpush.bf16.msra.mxu0 0
        %796 = vmatpush.bf16.msra.mxu0 %v787
        %797 = vmatmul.bf16.gmra.mxu0 %v784
        %v798 = vpop.f32.mrf.mxu0
        %v799 = vadd.f32 0.0, %v798
        %v800 = vpop.f32.mrf.mxu0
        %v801 = vadd.f32 0.0, %v800
        %802 = vdwg.mxu0
        %v804 = vsel %vm639, %v704, 0
        %v807 = vsel %vm682, %v705, 0
        %809 = vmatpush.bf16.msra.mxu0 0
        %810 = vmatpush.bf16.msra.mxu0 0
        %811 = vmatpush.bf16.msra.mxu0 0
        %812 = vmatpush.bf16.msra.mxu0 0
        %813 = vmatpush.bf16.msra.mxu0 0
        %814 = vmatpush.bf16.msra.mxu0 0
        %815 = vmatpush.bf16.msra.mxu0 0
        %816 = vmatpush.bf16.msra.mxu0 %v807
        %817 = vmatmul.bf16.gmra.mxu0 %v804
        %v818 = vpop.f32.mrf.mxu0
        %v819 = vadd.f32 %v799, %v818
        %v820 = vpop.f32.mrf.mxu0
        %v821 = vadd.f32 %v801, %v820
        %822 = vdwg.mxu0
        %823 = vrot.lane.b32.xlu0 %v638, 112
        %v824 = vpop.permute.xlu0 %823
        %825 = vrot.lane.b32.xlu0 %v710, 112
        %v826 = vpop.permute.xlu0 %825
        %v828 = vsel %vm639, %v824, 0
        %v831 = vsel %vm639, %v826, 0
        %833 = vmatpush.bf16.xpose.msra.mxu0 0
        %834 = vmatpush.bf16.xpose.msra.mxu0 0
        %835 = vmatpush.bf16.xpose.msra.mxu0 0
        %836 = vmatpush.bf16.xpose.msra.mxu0 0
        %837 = vmatpush.bf16.xpose.msra.mxu0 0
        %838 = vmatpush.bf16.xpose.msra.mxu0 0
        %839 = vmatpush.bf16.xpose.msra.mxu0 0
        %840 = vmatpush.bf16.xpose.msra.mxu0 %v831
        %841 = vmatmul.bf16.gmra.mxu0 %v828
        %v842 = vpop.f32.mrf.mxu0
        %v843 = vadd.f32 0.0, %v842
        %v844 = vpop.f32.mrf.mxu0
        %v845 = vadd.f32 0.0, %v844
        %846 = vdwg.mxu0
        %v847 = vsel %vm639, %v843, -inf
        %848 = vmax.xlane.f32.xlu0 %v847
        %v849 = vpop.xlane.xlu0 %848
        %v850 = vsel %vm639, %v845, -inf
        %851 = vmax.xlane.f32.xlu0 %v850
        %v852 = vpop.xlane.xlu0 %851
        %v853 = vsub.f32 %v843, %v849
        %v854 = vsub.f32 %v845, %v852
        %v855 = vmul.f32 %v853, 1.442695
        %v856 = vpow.pop %v855
        %v857 = vmul.f32 %v854, 1.442695
        %v858 = vpow.pop %v857
        %v859 = vsel %vm639, %v856, 0.0
        %860 = vadd.xlane.f32.xlu0 %v859
        %v861 = vpop.xlane.xlu0 %860
        %v862 = vsel %vm639, %v858, 0.0
        %863 = vadd.xlane.f32.xlu0 %v862
        %v864 = vpop.xlane.xlu0 %863
        %v865 = vpack.c.bf16 %v858, %v856
        %866 = vrot.lane.b32.xlu0 %v754, 112
        %v867 = vpop.permute.xlu0 %866
        %v869 = vsel %vm639, %v865, 0
        %v872 = vsel %vm682, %v867, 0
        %874 = vmatpush.bf16.msra.mxu0 0
        %875 = vmatpush.bf16.msra.mxu0 0
        %876 = vmatpush.bf16.msra.mxu0 0
        %877 = vmatpush.bf16.msra.mxu0 0
        %878 = vmatpush.bf16.msra.mxu0 0
        %879 = vmatpush.bf16.msra.mxu0 0
        %880 = vmatpush.bf16.msra.mxu0 0
        %881 = vmatpush.bf16.msra.mxu0 %v872
        %882 = vmatmul.bf16.gmra.mxu0 %v869
        %v883 = vpop.f32.mrf.mxu0
        %v884 = vadd.f32 0.0, %v883
        %v885 = vpop.f32.mrf.mxu0
        %v886 = vadd.f32 0.0, %v885
        %887 = vdwg.mxu0
        %v888 = vrcp.pop %v861
        %v889 = vrcp.pop %v864
        %v890 = vmul.f32 %v884, %v888
        %v891 = vmul.f32 %v886, %v889
        %v892 = vpack.c.bf16 %v891, %v890
        %v893 = vld [vmem:[#allocation13 + $0x8] sm:$0xf]
        %v895 = vsel %vm639, %v892, 0
        %v898 = vsel %vm682, %v893, 0
        %900 = vmatpush.bf16.msra.mxu0 0
        %901 = vmatpush.bf16.msra.mxu0 0
        %902 = vmatpush.bf16.msra.mxu0 0
        %903 = vmatpush.bf16.msra.mxu0 0
        %904 = vmatpush.bf16.msra.mxu0 0
        %905 = vmatpush.bf16.msra.mxu0 0
        %906 = vmatpush.bf16.msra.mxu0 0
        %907 = vmatpush.bf16.msra.mxu0 %v898
        %908 = vmatmul.bf16.gmra.mxu0 %v895
        %v909 = vpop.f32.mrf.mxu0
        %v910 = vadd.f32 0.0, %v909
        %v911 = vpop.f32.mrf.mxu0
        %v912 = vadd.f32 0.0, %v911
        %913 = vdwg.mxu0
        %v914 = vadd.f32 %v819, %v910
        %v915 = vadd.f32 %v821, %v912
        %916 = vrot.lane.b32.xlu0 %v638, 104
        %v917 = vpop.permute.xlu0 %916
        %918 = vrot.lane.b32.xlu0 %v710, 104
        %v919 = vpop.permute.xlu0 %918
        %v921 = vsel %vm639, %v917, 0
        %v924 = vsel %vm639, %v919, 0
        %926 = vmatpush.bf16.xpose.msra.mxu0 0
        %927 = vmatpush.bf16.xpose.msra.mxu0 0
        %928 = vmatpush.bf16.xpose.msra.mxu0 0
        %929 = vmatpush.bf16.xpose.msra.mxu0 0
        %930 = vmatpush.bf16.xpose.msra.mxu0 0
        %931 = vmatpush.bf16.xpose.msra.mxu0 0
        %932 = vmatpush.bf16.xpose.msra.mxu0 0
        %933 = vmatpush.bf16.xpose.msra.mxu0 %v924
        %934 = vmatmul.bf16.gmra.mxu0 %v921
        %v935 = vpop.f32.mrf.mxu0
        %v936 = vadd.f32 0.0, %v935
        %v937 = vpop.f32.mrf.mxu0
        %v938 = vadd.f32 0.0, %v937
        %939 = vdwg.mxu0
        %v940 = vsel %vm639, %v936, -inf
        %941 = vmax.xlane.f32.xlu0 %v940
        %v942 = vpop.xlane.xlu0 %941
        %v943 = vsel %vm639, %v938, -inf
        %944 = vmax.xlane.f32.xlu0 %v943
        %v945 = vpop.xlane.xlu0 %944
        %v946 = vsub.f32 %v936, %v942
        %v947 = vsub.f32 %v938, %v945
        %v948 = vmul.f32 %v946, 1.442695
        %v949 = vpow.pop %v948
        %v950 = vmul.f32 %v947, 1.442695
        %v951 = vpow.pop %v950
        %v952 = vsel %vm639, %v949, 0.0
        %953 = vadd.xlane.f32.xlu0 %v952
        %v954 = vpop.xlane.xlu0 %953
        %v955 = vsel %vm639, %v951, 0.0
        %956 = vadd.xlane.f32.xlu0 %v955
        %v957 = vpop.xlane.xlu0 %956
        %v958 = vpack.c.bf16 %v951, %v949
        %959 = vrot.lane.b32.xlu0 %v754, 104
        %v960 = vpop.permute.xlu0 %959
        %v962 = vsel %vm639, %v958, 0
        %v965 = vsel %vm682, %v960, 0
        %967 = vmatpush.bf16.msra.mxu0 0
        %968 = vmatpush.bf16.msra.mxu0 0
        %969 = vmatpush.bf16.msra.mxu0 0
        %970 = vmatpush.bf16.msra.mxu0 0
        %971 = vmatpush.bf16.msra.mxu0 0
        %972 = vmatpush.bf16.msra.mxu0 0
        %973 = vmatpush.bf16.msra.mxu0 0
        %974 = vmatpush.bf16.msra.mxu0 %v965
        %975 = vmatmul.bf16.gmra.mxu0 %v962
        %v976 = vpop.f32.mrf.mxu0
        %v977 = vadd.f32 0.0, %v976
        %v978 = vpop.f32.mrf.mxu0
        %v979 = vadd.f32 0.0, %v978
        %980 = vdwg.mxu0
        %v981 = vrcp.pop %v954
        %v982 = vrcp.pop %v957
        %v983 = vmul.f32 %v977, %v981
        %v984 = vmul.f32 %v979, %v982
        %v985 = vpack.c.bf16 %v984, %v983
        %v986 = vld [vmem:[#allocation13 + $0xc] sm:$0xf]
        %v988 = vsel %vm639, %v985, 0
        %v991 = vsel %vm682, %v986, 0
        %993 = vmatpush.bf16.msra.mxu0 0
        %994 = vmatpush.bf16.msra.mxu0 0
        %995 = vmatpush.bf16.msra.mxu0 0
        %996 = vmatpush.bf16.msra.mxu0 0
        %997 = vmatpush.bf16.msra.mxu0 0
        %998 = vmatpush.bf16.msra.mxu0 0
        %999 = vmatpush.bf16.msra.mxu0 0
        %1000 = vmatpush.bf16.msra.mxu0 %v991
        %1001 = vmatmul.bf16.gmra.mxu0 %v988
        %v1002 = vpop.f32.mrf.mxu0
        %v1003 = vadd.f32 0.0, %v1002
        %v1004 = vpop.f32.mrf.mxu0
        %v1005 = vadd.f32 0.0, %v1004
        %1006 = vdwg.mxu0
        %v1007 = vadd.f32 %v914, %v1003
        %v1008 = vadd.f32 %v915, %v1005
        %v1009 = vld [vmem:[%s9] sm:$0x1]
        %v1011 = vperm.slane %v1009, 0
        %v1013 = vadd.f32 %v1007, %v1011
        %v1014 = vadd.f32 %v1008, %v1011
        %1015 = vst.msk [vmem:[%s502] sm:$0xff] %vm612, %v1013
        %1016 = vst.msk [vmem:[%s502 + $0x8] sm:$0xff] %vm612, %v1014
        %s1017 = sand.u32 %s276, 1
        %s1018 = scalar_lea.sflag [#allocation6], %s1017
        %s1019 = sand.u32 %s276, 1
        %s1020 = smul.addr %s1019, 16
        %s1021 = scalar_lea.vmem [#allocation15], %s1020
        // Predicated region
        $region89: #{tpu_custom_call.1} parent=59 // pred_check
          %p1022 = pneg %p286
        $region90: #{tpu_custom_call.1} parent=59 // pred_check_branch
          %1024 = sbr.rel (%p1022) target = $region92
        $region91: #{tpu_custom_call.1} parent=59 // pred_region
          %s1025 = smul.u32 2, %s37
          %1027 = vsyncadd %s1018, 0
          %s1028 = smul.addr %s36, 2
          %s1029 = sadd.s32 %s1025, %s1028
          %s1030 = smul.addr %s1029, 8
          %s1031 = scalar_lea.hbm %s10, %s1030
          %s1032 = sshll.u32 %s1021, 4
          %s1033 = int_to_ptr.vmem [resolvable:$true] %s1032
          %s1034 = sshll.u32 %s1031, 4
          %s1035 = int_to_ptr.hbm [resolvable:$true] %s1034
          %1040 = dma.vmem_to_hbm [thread:$0]  %s1033, 256, %s1035, %s1018, 128, 128, 8
        $region92: #{tpu_custom_call.1} parent=59 // pred_fallthru
          _
      $region60: #{tpu_custom_call.1} parent=5 // pred_fallthru
        _
      %p1041 = scmp.le.s32.totalorder 2, %s27
      // Predicated region
      $region93: #{tpu_custom_call.1} parent=5 // pred_check
        %p1042 = pneg %p1041
      $region94: #{tpu_custom_call.1} parent=5 // pred_check_branch
        %1044 = sbr.rel (%p1042) target = $region96
      $region95: #{tpu_custom_call.1} parent=5 // pred_region
        %s1045 = ssub.s32 %s27, 2
        // Predicated region
        $region97: #{tpu_custom_call.1} parent=95 // pred_check
          %p1046 = pneg %p292
        $region98: #{tpu_custom_call.1} parent=95 // pred_check_branch
          %1048 = sbr.rel (%p1046) target = $region100
        $region99: #{tpu_custom_call.1} parent=95 // pred_region
          %s1049 = sand.u32 %s277, 1
          %s1050 = scalar_lea.sflag [#allocation6], %s1049
          %s1051 = sand.u32 %s277, 1
          %s1052 = smul.addr %s1051, 16
          %s1053 = scalar_lea.vmem [#allocation15], %s1052
          %1055 = dma.done %s1050, 256
        $region100: #{tpu_custom_call.1} parent=95 // pred_fallthru
          _
      $region96: #{tpu_custom_call.1} parent=5 // pred_fallthru
        _
    $region6: #{tpu_custom_call.1} parent=1 // loop_footer
      %s31 = sadd.s32 1, %s27
    $region7: #{tpu_custom_call.1} parent=1 // loop_footer_branch
      %26 = sbr.rel target = $region3
    $region8: #{tpu_custom_call.1} parent=1 // loop_exit
      _
    %1056 = vsyncpa [#allocation5], 1
    %s1057 = scalar_lea.sflag [#allocation5], 1
    %1058 = vsyncpa %s1057, 1
    %1059 = vsyncpa [#allocation8], 1
    %s1060 = scalar_lea.sflag [#allocation8], 1
    %1061 = vsyncpa %s1060, 1
    %1062 = vsyncpa [#allocation11], 1
    %1063 = vsyncpa [#allocation14], 1
    %1064 = vsyncpa [#allocation6], 1
    %s1065 = scalar_lea.sflag [#allocation6], 1
    %1066 = vsyncpa %s1065, 1

</llo_original>
